<compile_context>
chip_gen: v7x
topology: tpu7x:2x2x1
jax: 0.10.0
libtpu: 0.0.40
codegen_flags: <defaults>
</compile_context>

<pallas_src>
import functools
import math

import jax
import jax.numpy as jnp
from jax.experimental import pallas as pl
from jax.experimental.pallas import tpu as pltpu

_BN_EPS = 1e-5
_VMEM_LIMIT = 32 * 1024 * 1024  # safe on all generations incl. v7x (64 MiB phys)


def _device_kind():
    try:
        return jax.devices()[0].device_kind.lower()
    except Exception:
        return ""


_KIND = _device_kind()
# v2-v5 TensorCores have 128-wide MXUs; v6e/v7x have 2x256x256 MXUs.
_OLD_MXU = any(t in _KIND for t in ("v2", "v3", "v4", "v5"))
_GEMM_TM = 256
_GEMM_TN = 128 if _OLD_MXU else 256
_GEMM_TK = 512
# v5e/v6e have 128 MiB physical VMEM -> larger elementwise row tiles; v7x 64 MiB.
_ROW_TILE_BYTES = (4 << 20) if ("v5" in _KIND or "v6" in _KIND) else (2 << 20)


def _round_up(x, m):
    return (x + m - 1) // m * m


def _cp(*sems):
    return pltpu.CompilerParams(dimension_semantics=sems,
                                vmem_limit_bytes=_VMEM_LIMIT)


def _pick_tile(dim, max_tile, align):
    """Largest tile <= max_tile (multiple of align) that divides the aligned extent."""
    aligned = _round_up(dim, align)
    max_tile = min(max_tile, aligned)
    for t in range(max_tile, align - 1, -align):
        if aligned % t == 0:
            return t
    return align


def _row_tile(m, c):
    """Row tile for [rows, C] elementwise kernels (multiple of 8)."""
    tr = max(8, (_ROW_TILE_BYTES // (4 * c)) // 8 * 8)
    tr = min(tr, 4096)
    # Ensure >=2 grid blocks where possible so both v7x TensorCores get work.
    tr = min(tr, max(8, _round_up((m + 1) // 2, 8)))
    tr = min(tr, _round_up(m, 8))
    return tr


# --------------------------------------------------------------------------
# Tiled GEMM kernel (MXU): bf16 operands, f32 accumulation, fused epilogue
# (optional bias+ReLU and optional per-channel sum / sum-of-squares partials)
# --------------------------------------------------------------------------
def _matmul_kernel(*refs, has_bias, relu, emit_stats):
    idx = 0
    a_ref = refs[idx]; idx += 1
    b_ref = refs[idx]; idx += 1
    bias_ref = None
    if has_bias:
        bias_ref = refs[idx]; idx += 1
    o_ref = refs[idx]; idx += 1
    if emit_stats:
        sum_ref = refs[idx]; idx += 1
        sq_ref = refs[idx]; idx += 1
    acc_ref = refs[idx]

    @pl.when(pl.program_id(2) == 0)
    def _():
        acc_ref[...] = jnp.zeros_like(acc_ref)

    acc_ref[...] += jnp.dot(a_ref[...], b_ref[...],
                            preferred_element_type=jnp.float32)

    @pl.when(pl.program_id(2) == pl.num_programs(2) - 1)
    def _():
        y = acc_ref[...]
        if emit_stats:  # per-(M-block, N-block) channel partials for BatchNorm
            sum_ref[...] = jnp.sum(y, axis=0, keepdims=True).reshape(sum_ref.shape)
            sq_ref[...] = jnp.sum(y * y, axis=0, keepdims=True).reshape(sq_ref.shape)
        if has_bias:
            y = y + bias_ref[...]
        if relu:
            y = jnp.maximum(y, 0.0)
        o_ref[...] = y.astype(o_ref.dtype)


def pallas_matmul(a, b, bias=None, relu=False, emit_stats=False,
                  out_dtype=jnp.bfloat16):
    """a:[M,K] @ b:[K,N].  Returns out (and [1,N] col sum / sumsq if emit_stats)."""
    m, k = a.shape
    k2, n = b.shape
    assert k == k2
    tm = _pick_tile(m, _GEMM_TM, 8)
    tn = _pick_tile(n, _GEMM_TN, 128)
    tk = _pick_tile(k, _GEMM_TK, 128)
    mp, kp, np_ = _round_up(m, tm), _round_up(k, tk), _round_up(n, tn)

    # cast BEFORE padding so any pad copy is half-width bf16
    a_p = a.astype(jnp.bfloat16)
    b_p = b.astype(jnp.bfloat16)
    if (mp, kp) != (m, k):
        a_p = jnp.pad(a_p, ((0, mp - m), (0, kp - k)))
    if (kp, np_) != (k, n):
        b_p = jnp.pad(b_p, ((0, kp - k), (0, np_ - n)))

    grid = (mp // tm, np_ // tn, kp // tk)
    in_specs = [pl.BlockSpec((tm, tk), lambda i, j, kk: (i, kk)),
                pl.BlockSpec((tk, tn), lambda i, j, kk: (kk, j))]
    operands = [a_p, b_p]
    if bias is not None:
        bias_p = bias.astype(jnp.float32).reshape(1, n)
        if np_ != n:
            bias_p = jnp.pad(bias_p, ((0, 0), (0, np_ - n)))
        in_specs.append(pl.BlockSpec((1, tn), lambda i, j, kk: (0, j)))
        operands.append(bias_p)

    if emit_stats:
        out_shape = (jax.ShapeDtypeStruct((mp, np_), out_dtype),
                     jax.ShapeDtypeStruct((grid[0], 1, np_), jnp.float32),
                     jax.ShapeDtypeStruct((grid[0], 1, np_), jnp.float32))
        out_specs = (pl.BlockSpec((tm, tn), lambda i, j, kk: (i, j)),
                     pl.BlockSpec((1, 1, tn), lambda i, j, kk: (i, 0, j)),
                     pl.BlockSpec((1, 1, tn), lambda i, j, kk: (i, 0, j)))
    else:
        out_shape = jax.ShapeDtypeStruct((mp, np_), out_dtype)
        out_specs = pl.BlockSpec((tm, tn), lambda i, j, kk: (i, j))

    kernel = functools.partial(_matmul_kernel, has_bias=bias is not None,
                               relu=relu, emit_stats=emit_stats)
    res = pl.pallas_call(
        kernel,
        out_shape=out_shape,
        grid=grid,
        in_specs=in_specs,
        out_specs=out_specs,
        scratch_shapes=[pltpu.VMEM((tm, tn), jnp.float32)],
        compiler_params=_cp("parallel", "parallel", "arbitrary"),
    )(*operands)

    if not emit_stats:
        out = res
        return out[:m, :n] if (mp, np_) != (m, n) else out
    out, s, q = res
    out = out[:m, :n] if (mp, np_) != (m, n) else out
    s = jnp.sum(s, axis=0)[:, :n]   # [1, n]
    q = jnp.sum(q, axis=0)[:, :n]   # [1, n]
    return out, s, q


# --------------------------------------------------------------------------
# Row-wise elementwise kernels (f32 math, bf16 storage)
# --------------------------------------------------------------------------
def _affine_kernel(x_ref, s_ref, t_ref, o_ref, *, relu):
    y = x_ref[...].astype(jnp.float32) * s_ref[...] + t_ref[...]
    if relu:
        y = jnp.maximum(y, 0.0)
    o_ref[...] = y.astype(o_ref.dtype)


def _affine_add_relu_kernel(x_ref, r_ref, s_ref, t_ref, o_ref):
    y = (x_ref[...].astype(jnp.float32) * s_ref[...] + t_ref[...]
         + r_ref[...].astype(jnp.float32))
    o_ref[...] = jnp.maximum(y, 0.0).astype(o_ref.dtype)


def _dual_affine_add_relu_kernel(x_ref, r_ref, sx_ref, tx_ref, sr_ref, tr_ref,
                                 o_ref):
    y = (x_ref[...].astype(jnp.float32) * sx_ref[...] + tx_ref[...]
         + r_ref[...].astype(jnp.float32) * sr_ref[...] + tr_ref[...])
    o_ref[...] = jnp.maximum(y, 0.0).astype(o_ref.dtype)


def _rowwise_call(kernel_fn, big_inputs, chan_inputs, out_dtype=jnp.bfloat16):
    """big_inputs: [M,C] arrays; chan_inputs: [1,C] arrays.  Gridded over rows."""
    m, c = big_inputs[0].shape
    tr = _row_tile(m, c)
    mp = _round_up(m, tr)
    padded = [jnp.pad(x, ((0, mp - m), (0, 0))) if mp != m else x
              for x in big_inputs]
    big_spec = pl.BlockSpec((tr, c), lambda i: (i, 0))
    chan_spec = pl.BlockSpec((1, c), lambda i: (0, 0))
    out = pl.pallas_call(
        kernel_fn,
        out_shape=jax.ShapeDtypeStruct((mp, c), out_dtype),
        grid=(mp // tr,),
        in_specs=[big_spec] * len(padded) + [chan_spec] * len(chan_inputs),
        out_specs=big_spec,
        compiler_params=_cp("parallel"),
    )(*padded, *chan_inputs)
    return out[:m] if mp != m else out


# --------------------------------------------------------------------------
# Global average pool kernel
# --------------------------------------------------------------------------
def _gap_kernel(x_ref, o_ref):
    o_ref[...] = jnp.mean(x_ref[...].astype(jnp.float32), axis=1)


def pallas_gap(x):  # x: [N, HW, C] -> [N, C] f32
    n, hw, c = x.shape
    bn = 8
    n_pad = _round_up(n, bn)
    xp = jnp.pad(x, ((0, n_pad - n), (0, 0), (0, 0))) if n_pad != n else x
    out = pl.pallas_call(
        _gap_kernel,
        out_shape=jax.ShapeDtypeStruct((n_pad, c), jnp.float32),
        grid=(n_pad // bn,),
        in_specs=[pl.BlockSpec((bn, hw, c), lambda i: (i, 0, 0))],
        out_specs=pl.BlockSpec((bn, c), lambda i: (i, 0)),
        compiler_params=_cp("parallel"),
    )(xp)
    return out[:n]


# --------------------------------------------------------------------------
# Glue ops (fused by XLA inside the jitted units)
# --------------------------------------------------------------------------
def conv2d(x, w, stride, pad):
    """x: NHWC, w: [KH,KW,Cin,Cout] -> (y NHWC bf16, col_sum [1,Cout], col_sq [1,Cout])."""
    kh, kw, cin, cout = w.shape
    if kh == 1 and kw == 1:  # 1x1 conv: pure GEMM, no im2col
        if stride != 1:
            x = x[:, ::stride, ::stride, :]
        n, oh, ow, _ = x.shape
        y, s, q = pallas_matmul(x.reshape(n * oh * ow, cin),
                                w.reshape(cin, cout), emit_stats=True)
        return y.reshape(n, oh, ow, cout), s, q
    # TODO(synk): 3x3/7x7 convs still materialize bf16 im2col patches in HBM; an
    # implicit-GEMM (tap-folded, manually DMA'd) kernel would remove this copy.
    x = x.astype(jnp.bfloat16)
    if pad:
        x = jnp.pad(x, ((0, 0), (pad, pad), (pad, pad), (0, 0)))
    n, hp, wp, _ = x.shape
    oh = (hp - kh) // stride + 1
    ow = (wp - kw) // stride + 1
    cols = []
    for i in range(kh):
        for j in range(kw):
            cols.append(x[:, i:i + stride * (oh - 1) + 1:stride,
                          j:j + stride * (ow - 1) + 1:stride, :])
    patches = jnp.concatenate(cols, axis=-1).reshape(n * oh * ow, kh * kw * cin)
    y, s, q = pallas_matmul(patches, w.reshape(kh * kw * cin, cout),
                            emit_stats=True)
    return y.reshape(n, oh, ow, cout), s, q


def maxpool_3x3_s2(x):
    """3x3/s2/p1 max pool; taps folded pairwise (single fused XLA pass)."""
    n, h, w, c = x.shape
    neg = jnp.finfo(x.dtype).min
    xp = jnp.pad(x, ((0, 0), (1, 1), (1, 1), (0, 0)), constant_values=neg)
    oh = (h + 2 - 3) // 2 + 1
    ow = (w + 2 - 3) // 2 + 1
    out = None
    for i in range(3):
        for j in range(3):
            win = xp[:, i:i + 2 * (oh - 1) + 1:2, j:j + 2 * (ow - 1) + 1:2, :]
            out = win if out is None else jnp.maximum(out, win)
    return out


def _bn_scale_shift(s, q, m, p):
    """Fold batch-norm (batch stats) into per-channel scale/shift."""
    mean = s / m
    var = jnp.maximum(q / m - mean * mean, 0.0)  # biased var (PyTorch normalize)
    scale = p["g"] * jax.lax.rsqrt(var + _BN_EPS)
    shift = p["b"] - mean * scale
    return scale, shift


def batchnorm_act(x, s, q, p, relu):
    """BN (stats come fused from the conv GEMM) + optional ReLU, bf16 output."""
    n, h, w, c = x.shape
    m = n * h * w
    scale, shift = _bn_scale_shift(s, q, m, p)
    x2 = x.reshape(m, c)
    if c < 128 and 128 % c == 0 and m % (128 // c) == 0:
        fold = 128 // c  # lane-dense stores for narrow channels (stem / layer1 C=64)
        x2 = x2.reshape(m // fold, c * fold)
        scale = jnp.tile(scale, (1, fold))
        shift = jnp.tile(shift, (1, fold))
    y = _rowwise_call(functools.partial(_affine_kernel, relu=relu),
                      [x2], [scale, shift], out_dtype=jnp.bfloat16)
    return y.reshape(n, h, w, c)


# --------------------------------------------------------------------------
# ResNet-50 structure
# --------------------------------------------------------------------------
@functools.partial(jax.jit, static_argnames=("stride",))
def bottleneck_forward(p, x, *, stride):
    out, s1, q1 = conv2d(x, p["conv1"], stride=1, pad=0)
    out = batchnorm_act(out, s1, q1, p["bn1"], relu=True)
    out, s2, q2 = conv2d(out, p["conv2"], stride=stride, pad=1)
    out = batchnorm_act(out, s2, q2, p["bn2"], relu=True)
    out, s3, q3 = conv2d(out, p["conv3"], stride=1, pad=0)
    n, h, w, c = out.shape
    m = n * h * w
    sc3, sh3 = _bn_scale_shift(s3, q3, m, p["bn3"])
    out2 = out.reshape(m, c)
    if "downsample" in p:  # fuse bn3 + downsample-bn + add + relu (one pass)
        ident, sd, qd = conv2d(x, p["downsample"]["conv"], stride=stride, pad=0)
        scd, shd = _bn_scale_shift(sd, qd, m, p["downsample"]["bn"])
        y2 = _rowwise_call(_dual_affine_add_relu_kernel,
                           [out2, ident.reshape(m, c)], [sc3, sh3, scd, shd],
                           out_dtype=jnp.bfloat16)
    else:  # fuse bn3 + add + relu
        y2 = _rowwise_call(_affine_add_relu_kernel,
                           [out2, x.reshape(m, c)], [sc3, sh3],
                           out_dtype=jnp.bfloat16)
    return y2.reshape(n, h, w, c)


@jax.jit
def stem_forward(conv_w, bn_p, x_nchw):
    x = jnp.transpose(x_nchw, (0, 2, 3, 1)).astype(jnp.float32)  # NCHW -> NHWC
    y, s, q = conv2d(x, conv_w, stride=2, pad=3)
    y = batchnorm_act(y, s, q, bn_p, relu=True)
    return maxpool_3x3_s2(y)


@jax.jit
def head_forward(x, w1, b1, w2, b2):
    n, h, w, c = x.shape
    feat = pallas_gap(x.reshape(n, h * w, c))                        # [N, 2048]
    h1 = pallas_matmul(feat, w1, bias=b1, relu=True,
                       out_dtype=jnp.bfloat16)                       # fused bias+ReLU
    return pallas_matmul(h1, w2, bias=b2, relu=False,
                         out_dtype=jnp.float32)                      # fused bias


_LAYER_STRIDES = {"layer1": 1, "layer2": 2, "layer3": 2, "layer4": 2}


def resnet_simclr_forward(params, x_nchw):
    x = stem_forward(params["conv1"], params["bn1"], x_nchw)
    for name in ("layer1", "layer2", "layer3", "layer4"):
        first_stride = _LAYER_STRIDES[name]
        for bi, block in enumerate(params[name]):
            x = bottleneck_forward(block, x,
                                   stride=first_stride if bi == 0 else 1)
    return head_forward(x, params["fc_w1"], params["fc_b1"],
                        params["fc_w2"], params["fc_b2"])


# --------------------------------------------------------------------------
# Parameter init (matches freshly-built torchvision resnet50 structure)
# --------------------------------------------------------------------------
class KeyGen:
    def __init__(self, key):
        self.key = key

    def __call__(self):
        self.key, sub = jax.random.split(self.key)
        return sub


def bn_params(c):
    return {"g": jnp.ones((1, c), jnp.float32),
            "b": jnp.zeros((1, c), jnp.float32)}


def conv_params(kg, kh, kw, cin, cout):
    w = jax.random.normal(kg(), (kh, kw, cin, cout), jnp.float32)
    return w * jnp.float32(math.sqrt(2.0 / (kh * kw * cin)))


def bottleneck_params(kg, cin, planes, stride):
    p = {
        "conv1": conv_params(kg, 1, 1, cin, planes), "bn1": bn_params(planes),
        "conv2": conv_params(kg, 3, 3, planes, planes), "bn2": bn_params(planes),
        "conv3": conv_params(kg, 1, 1, planes, planes * 4),
        "bn3": bn_params(planes * 4),
    }
    if stride != 1 or cin != planes * 4:
        p["downsample"] = {"conv": conv_params(kg, 1, 1, cin, planes * 4),
                           "bn": bn_params(planes * 4)}
    return p


def layer_params(kg, cin, planes, blocks, stride):
    ps = [bottleneck_params(kg, cin, planes, stride)]
    for _ in range(blocks - 1):
        ps.append(bottleneck_params(kg, planes * 4, planes, 1))
    return ps


def init_params(key, out_dim):
    kg = KeyGen(key)
    dim_mlp = 2048
    return {
        "conv1": conv_params(kg, 7, 7, 3, 64),
        "bn1": bn_params(64),
        "layer1": layer_params(kg, 64, 64, 3, 1),
        "layer2": layer_params(kg, 256, 128, 4, 2),
        "layer3": layer_params(kg, 512, 256, 6, 2),
        "layer4": layer_params(kg, 1024, 512, 3, 2),
        "fc_w1": jax.random.normal(kg(), (dim_mlp, dim_mlp), jnp.float32)
                 * jnp.float32(1.0 / math.sqrt(dim_mlp)),
        "fc_b1": jnp.zeros((1, dim_mlp), jnp.float32),
        "fc_w2": jax.random.normal(kg(), (dim_mlp, out_dim), jnp.float32)
                 * jnp.float32(1.0 / math.sqrt(dim_mlp)),
        "fc_b2": jnp.zeros((1, out_dim), jnp.float32),
    }


if __name__ == "__main__":
    key = jax.random.PRNGKey(0)
    pkey, xkey = jax.random.split(key)
    out_dim = 128
    params = init_params(pkey, out_dim)
    x = jax.random.normal(xkey, (2, 3, 32, 32), jnp.float32)  # NCHW like PyTorch
    y = resnet_simclr_forward(params, x)
    y = jax.block_until_ready(y)
    assert y.shape == (2, out_dim), y.shape
    assert bool(jnp.all(jnp.isfinite(y)))
    print("KERNEL_OK")
</pallas_src>

<mosaic_0001>
module attributes {stable_mosaic.version = 11 : i64} {
  func.func @_matmul_kernel(%arg0: i32, %arg1: i32, %arg2: i32, %arg3: memref<256x256xbf16, #tpu.memory_space<vmem>>, %arg4: memref<256x128xbf16, #tpu.memory_space<vmem>>, %arg5: memref<256x128xbf16, #tpu.memory_space<vmem>>, %arg6: memref<1x1x128xf32, #tpu.memory_space<vmem>>, %arg7: memref<1x1x128xf32, #tpu.memory_space<vmem>>, %arg8: memref<256x128xf32, #tpu.memory_space<vmem>>) attributes {dimension_semantics = [#tpu.dimension_semantics<parallel>, #tpu.dimension_semantics<parallel>, #tpu.dimension_semantics<arbitrary>], iteration_bounds = array<i64: 2, 1, 1>, scalar_prefetch = 0 : i64, scratch_operands = 1 : i64, tpu.core_type = #tpu.core_type<tc>, window_params = [{transform_indices = @transform_0, window_bounds = array<i64: 256, 256>}, {transform_indices = @transform_1, window_bounds = array<i64: 256, 128>}, {transform_indices = @transform_2, window_bounds = array<i64: 256, 128>}, {transform_indices = @transform_3, window_bounds = array<i64: 1, 1, 128>}, {transform_indices = @transform_4, window_bounds = array<i64: 1, 1, 128>}]} {
    %c0_i32 = arith.constant 0 : i32
    %0 = arith.cmpi eq, %arg2, %c0_i32 : i32
    %1 = arith.extui %0 : i1 to i32
    %c0_i32_0 = arith.constant 0 : i32
    %2 = arith.cmpi ne, %1, %c0_i32_0 : i32
    scf.if %2 {
      %cst_10 = arith.constant 0.000000e+00 : f32
      %12 = vector.broadcast %cst_10 : f32 to vector<256x128xf32>
      %c0_11 = arith.constant 0 : index
      %c0_12 = arith.constant 0 : index
      %13 = vector.load %arg8[%c0_11, %c0_12] : memref<256x128xf32, #tpu.memory_space<vmem>>, vector<256x128xf32>
      tpu.vector_store %arg8[%c0_11, %c0_12], %12 {strides = array<i32>} : memref<256x128xf32, #tpu.memory_space<vmem>>, vector<256x128xf32>,
    } else {
    }
    %c0 = arith.constant 0 : index
    %c0_1 = arith.constant 0 : index
    %3 = vector.load %arg8[%c0, %c0_1] : memref<256x128xf32, #tpu.memory_space<vmem>>, vector<256x128xf32>
    %c0_2 = arith.constant 0 : index
    %c0_3 = arith.constant 0 : index
    %4 = vector.load %arg3[%c0_2, %c0_3] : memref<256x256xbf16, #tpu.memory_space<vmem>>, vector<256x256xbf16>
    %c0_4 = arith.constant 0 : index
    %c0_5 = arith.constant 0 : index
    %5 = vector.load %arg4[%c0_4, %c0_5] : memref<256x128xbf16, #tpu.memory_space<vmem>>, vector<256x128xbf16>
    %cst = arith.constant dense<0.000000e+00> : vector<256x128xf32>
    %6 = tpu.matmul %4, %5, %cst {dimension_numbers = #tpu.dot_dimension_numbers<[1], [0], [0], [1], [0, 0, 1, 1], [], []>} : vector<256x256xbf16>, vector<256x128xbf16>, vector<256x128xf32> -> vector<256x128xf32>
    %7 = arith.addf %3, %6 : vector<256x128xf32>
    %c0_6 = arith.constant 0 : index
    %c0_7 = arith.constant 0 : index
    %8 = vector.load %arg8[%c0_6, %c0_7] : memref<256x128xf32, #tpu.memory_space<vmem>>, vector<256x128xf32>
    tpu.vector_store %arg8[%c0_6, %c0_7], %7 {strides = array<i32>} : memref<256x128xf32, #tpu.memory_space<vmem>>, vector<256x128xf32>,
    %c0_i32_8 = arith.constant 0 : i32
    %9 = arith.cmpi eq, %arg2, %c0_i32_8 : i32
    %10 = arith.extui %9 : i1 to i32
    %c0_i32_9 = arith.constant 0 : i32
    %11 = arith.cmpi ne, %10, %c0_i32_9 : i32
    scf.if %11 {
      %c0_10 = arith.constant 0 : index
      %c0_11 = arith.constant 0 : index
      %12 = vector.load %arg8[%c0_10, %c0_11] : memref<256x128xf32, #tpu.memory_space<vmem>>, vector<256x128xf32>
      %cst_12 = arith.constant dense<0.000000e+00> : vector<128xf32>
      %13 = vector.multi_reduction <add>, %12, %cst_12 [0] : vector<256x128xf32> to vector<128xf32>
      %14 = vector.shape_cast %13 : vector<128xf32> to vector<1x128xf32>
      %15 = vector.shape_cast %14 : vector<1x128xf32> to vector<1x1x128xf32>
      %c0_13 = arith.constant 0 : index
      %c0_14 = arith.constant 0 : index
      %c0_15 = arith.constant 0 : index
      %16 = vector.load %arg6[%c0_13, %c0_14, %c0_15] : memref<1x1x128xf32, #tpu.memory_space<vmem>>, vector<1x1x128xf32>
      tpu.vector_store %arg6[%c0_13, %c0_14, %c0_15], %15 {strides = array<i32>} : memref<1x1x128xf32, #tpu.memory_space<vmem>>, vector<1x1x128xf32>,
      %17 = arith.mulf %12, %12 : vector<256x128xf32>
      %cst_16 = arith.constant dense<0.000000e+00> : vector<128xf32>
      %18 = vector.multi_reduction <add>, %17, %cst_16 [0] : vector<256x128xf32> to vector<128xf32>
      %19 = vector.shape_cast %18 : vector<128xf32> to vector<1x128xf32>
      %20 = vector.shape_cast %19 : vector<1x128xf32> to vector<1x1x128xf32>
      %c0_17 = arith.constant 0 : index
      %c0_18 = arith.constant 0 : index
      %c0_19 = arith.constant 0 : index
      %21 = vector.load %arg7[%c0_17, %c0_18, %c0_19] : memref<1x1x128xf32, #tpu.memory_space<vmem>>, vector<1x1x128xf32>
      tpu.vector_store %arg7[%c0_17, %c0_18, %c0_19], %20 {strides = array<i32>} : memref<1x1x128xf32, #tpu.memory_space<vmem>>, vector<1x1x128xf32>,
      %22 = arith.truncf %12 : vector<256x128xf32> to vector<256x128xbf16>
      %c0_20 = arith.constant 0 : index
      %c0_21 = arith.constant 0 : index
      %23 = vector.load %arg5[%c0_20, %c0_21] : memref<256x128xbf16, #tpu.memory_space<vmem>>, vector<256x128xbf16>
      tpu.vector_store %arg5[%c0_20, %c0_21], %22 {strides = array<i32>} : memref<256x128xbf16, #tpu.memory_space<vmem>>, vector<256x128xbf16>,
    } else {
    }
    return
  }
  func.func @transform_0(%arg0: i32, %arg1: i32, %arg2: i32) -> (i32, i32) {
    %c0_i32 = arith.constant 0 : i32
    return %arg0, %arg2 : i32, i32
  }
  func.func @transform_1(%arg0: i32, %arg1: i32, %arg2: i32) -> (i32, i32) {
    %c0_i32 = arith.constant 0 : i32
    return %arg2, %arg1 : i32, i32
  }
  func.func @transform_2(%arg0: i32, %arg1: i32, %arg2: i32) -> (i32, i32) {
    %c0_i32 = arith.constant 0 : i32
    return %arg0, %arg1 : i32, i32
  }
  func.func @transform_3(%arg0: i32, %arg1: i32, %arg2: i32) -> (i32, i32, i32) {
    %c0_i32 = arith.constant 0 : i32
    %c0_i32_0 = arith.constant 0 : i32
    return %arg0, %c0_i32, %arg1 : i32, i32, i32
  }
  func.func @transform_4(%arg0: i32, %arg1: i32, %arg2: i32) -> (i32, i32, i32) {
    %c0_i32 = arith.constant 0 : i32
    %c0_i32_0 = arith.constant 0 : i32
    return %arg0, %c0_i32, %arg1 : i32, i32, i32
  }
}

module attributes {stable_mosaic.version = 11 : i64} {
  func.func @_affine_kernel(%arg0: i32, %arg1: memref<128x128xbf16, #tpu.memory_space<vmem>>, %arg2: memref<1x128xf32, #tpu.memory_space<vmem>>, %arg3: memref<1x128xf32, #tpu.memory_space<vmem>>, %arg4: memref<128x128xbf16, #tpu.memory_space<vmem>>) attributes {dimension_semantics = [#tpu.dimension_semantics<parallel>], iteration_bounds = array<i64: 2>, scalar_prefetch = 0 : i64, scratch_operands = 0 : i64, tpu.core_type = #tpu.core_type<tc>, window_params = [{transform_indices = @transform_0, window_bounds = array<i64: 128, 128>}, {pipeline_mode = #tpu.pipeline_mode<synchronous>, transform_indices = @transform_1, window_bounds = array<i64: 1, 128>}, {pipeline_mode = #tpu.pipeline_mode<synchronous>, transform_indices = @transform_2, window_bounds = array<i64: 1, 128>}, {transform_indices = @transform_3, window_bounds = array<i64: 128, 128>}]} {
    %c0 = arith.constant 0 : index
    %c0_0 = arith.constant 0 : index
    %0 = vector.load %arg1[%c0, %c0_0] : memref<128x128xbf16, #tpu.memory_space<vmem>>, vector<128x128xbf16>
    %1 = arith.extf %0 : vector<128x128xbf16> to vector<128x128xf32>
    %c0_1 = arith.constant 0 : index
    %c0_2 = arith.constant 0 : index
    %2 = vector.load %arg2[%c0_1, %c0_2] : memref<1x128xf32, #tpu.memory_space<vmem>>, vector<1x128xf32>
    %3 = vector.broadcast %2 : vector<1x128xf32> to vector<128x128xf32>
    %4 = arith.mulf %1, %3 : vector<128x128xf32>
    %c0_3 = arith.constant 0 : index
    %c0_4 = arith.constant 0 : index
    %5 = vector.load %arg3[%c0_3, %c0_4] : memref<1x128xf32, #tpu.memory_space<vmem>>, vector<1x128xf32>
    %6 = vector.broadcast %5 : vector<1x128xf32> to vector<128x128xf32>
    %7 = arith.addf %4, %6 : vector<128x128xf32>
    %cst = arith.constant 0.000000e+00 : f32
    %8 = vector.broadcast %cst : f32 to vector<128x128xf32>
    %9 = arith.maximumf %7, %8 : vector<128x128xf32>
    %10 = arith.truncf %9 : vector<128x128xf32> to vector<128x128xbf16>
    %c0_5 = arith.constant 0 : index
    %c0_6 = arith.constant 0 : index
    %11 = vector.load %arg4[%c0_5, %c0_6] : memref<128x128xbf16, #tpu.memory_space<vmem>>, vector<128x128xbf16>
    tpu.vector_store %arg4[%c0_5, %c0_6], %10 {strides = array<i32>} : memref<128x128xbf16, #tpu.memory_space<vmem>>, vector<128x128xbf16>,
    return
  }
  func.func @transform_0(%arg0: i32) -> (i32, i32) {
    %c0_i32 = arith.constant 0 : i32
    %c0_i32_0 = arith.constant 0 : i32
    return %arg0, %c0_i32 : i32, i32
  }
  func.func @transform_1(%arg0: i32) -> (i32, i32) {
    %c0_i32 = arith.constant 0 : i32
    %c0_i32_0 = arith.constant 0 : i32
    %c0_i32_1 = arith.constant 0 : i32
    return %c0_i32, %c0_i32_0 : i32, i32
  }
  func.func @transform_2(%arg0: i32) -> (i32, i32) {
    %c0_i32 = arith.constant 0 : i32
    %c0_i32_0 = arith.constant 0 : i32
    %c0_i32_1 = arith.constant 0 : i32
    return %c0_i32, %c0_i32_0 : i32, i32
  }
  func.func @transform_3(%arg0: i32) -> (i32, i32) {
    %c0_i32 = arith.constant 0 : i32
    %c0_i32_0 = arith.constant 0 : i32
    return %arg0, %c0_i32 : i32, i32
  }
}

</mosaic_0001>

<llo_original>
// kernel: stem_forward.3
$region0: #{stem_forward.3}
  #allocation0 [shape = 'u32[]', space=smem, size = 0x4, offset = 0x4, fixed_abs, tag = 'smem constant byte address 0x4 - core index']
  #allocation1 [shape = 'u32[144,128]{1,0:T(1,128)}', space=vmem, size = 0x12000, scoped, tag = 'internal scratch']
  %s0 = inlined_call_operand.vmem [shape: bf16[256,128], index: 0, kind: input, shape index: {}]
  %s1 = inlined_call_operand.vmem [shape: f32[1,128], index: 1, kind: input, shape index: {}]
  %s2 = inlined_call_operand.vmem [shape: f32[1,128], index: 2, kind: input, shape index: {}]
  %s3 = inlined_call_operand.vmem [shape: bf16[256,128], index: 3, kind: output, shape index: {}]
  %s4 = sld [smem:[#allocation0]]
  $region45: #{stem_forward.3} parent=0
    _
  %s6 = ssub.s32 1, %s4
  %s7 = scalar_select 0, %s6, %s4
  loop: start=0, step=1, limit=4
  $region2: #{stem_forward.3} parent=0 // loop_pre_header
    _
  $region3: #{stem_forward.3} parent=0 // loop_header
    %s9 = sphi 0, %s13
    %p10 = scmp.ge.s32.totalorder %s9, 4
    %s19 = sphi 0, %s21
    %s22 = sphi 0, %s19
    %s23 = sphi 0, %s22
    %s39 = sphi 0, %s23
    %s43 = sphi 0, %s43
    %s45 = sphi 0, %s43
    %s46 = sphi 0, %s45
    %s60 = sphi 0, %s46
    %s64 = sphi 0, %s64
    %s66 = sphi 0, %s64
    %s67 = sphi 0, %s66
    %s81 = sphi 0, %s67
    %s87 = sphi 0, %s89
    %s90 = sphi 0, %s87
    %s91 = sphi 0, %s90
    %s107 = sphi 0, %s91
  $region4: #{stem_forward.3} parent=0 // loop_header_branch
    %12 = sbr.rel (%p10) target = $region8
  $region5: #{stem_forward.3} parent=0 // loop_body
    %s14 = ssub.s32 %s9, 1
    %s15 = ssub.s32 %s9, 2
    %s16 = sadd.s32 %s9, 1
    %s17 = ssub.s32 %s9, %s16
    %p18 = scmp.eq.s32.totalorder %s17, 0
    %s20 = sadd.s32 %s19, 1
    %s21 = scalar_select %p18, %s19, %s20
    %p24 = pneg %p18
    %p25 = scmp.eq.s32.totalorder %s9, 1
    %p26 = por %p24, %p25
    %p27 = scmp.ne.s32.totalorder %s19, %s22
    %p28 = scmp.eq.s32.totalorder %s9, 0
    %p29 = por %p27, %p28
    %p30 = scmp.ne.s32.totalorder %s19, %s22
    %p31 = scmp.eq.s32.totalorder %s14, 1
    %p32 = por %p30, %p31
    %p33 = scmp.ne.s32.totalorder %s22, %s23
    %p34 = scmp.eq.s32.totalorder %s14, 0
    %p35 = por %p33, %p34
    %p36 = scmp.ne.s32.totalorder %s22, %s23
    %p37 = scmp.eq.s32.totalorder %s15, 1
    %p38 = por %p36, %p37
    %p40 = scmp.ne.s32.totalorder %s23, %s39
    %p41 = scmp.eq.s32.totalorder %s15, 0
    %p42 = por %p40, %p41
    %s44 = sadd.s32 %s43, 1
    %p47 = scmp.eq.s32.totalorder %s9, 1
    %p48 = scmp.ne.s32.totalorder %s43, %s45
    %p49 = scmp.eq.s32.totalorder %s9, 0
    %p50 = por %p48, %p49
    %p51 = scmp.ne.s32.totalorder %s43, %s45
    %p52 = scmp.eq.s32.totalorder %s14, 1
    %p53 = por %p51, %p52
    %p54 = scmp.ne.s32.totalorder %s45, %s46
    %p55 = scmp.eq.s32.totalorder %s14, 0
    %p56 = por %p54, %p55
    %p57 = scmp.ne.s32.totalorder %s45, %s46
    %p58 = scmp.eq.s32.totalorder %s15, 1
    %p59 = por %p57, %p58
    %p61 = scmp.ne.s32.totalorder %s46, %s60
    %p62 = scmp.eq.s32.totalorder %s15, 0
    %p63 = por %p61, %p62
    %s65 = sadd.s32 %s64, 1
    %p68 = scmp.eq.s32.totalorder %s9, 1
    %p69 = scmp.ne.s32.totalorder %s64, %s66
    %p70 = scmp.eq.s32.totalorder %s9, 0
    %p71 = por %p69, %p70
    %p72 = scmp.ne.s32.totalorder %s64, %s66
    %p73 = scmp.eq.s32.totalorder %s14, 1
    %p74 = por %p72, %p73
    %p75 = scmp.ne.s32.totalorder %s66, %s67
    %p76 = scmp.eq.s32.totalorder %s14, 0
    %p77 = por %p75, %p76
    %p78 = scmp.ne.s32.totalorder %s66, %s67
    %p79 = scmp.eq.s32.totalorder %s15, 1
    %p80 = por %p78, %p79
    %p82 = scmp.ne.s32.totalorder %s67, %s81
    %p83 = scmp.eq.s32.totalorder %s15, 0
    %p84 = por %p82, %p83
    %s85 = ssub.s32 %s9, %s16
    %p86 = scmp.eq.s32.totalorder %s85, 0
    %s88 = sadd.s32 %s87, 1
    %s89 = scalar_select %p86, %s87, %s88
    %p92 = pneg %p86
    %p93 = scmp.eq.s32.totalorder %s9, 1
    %p94 = por %p92, %p93
    %p95 = scmp.ne.s32.totalorder %s87, %s90
    %p96 = scmp.eq.s32.totalorder %s9, 0
    %p97 = por %p95, %p96
    %p98 = scmp.ne.s32.totalorder %s87, %s90
    %p99 = scmp.eq.s32.totalorder %s14, 1
    %p100 = por %p98, %p99
    %p101 = scmp.ne.s32.totalorder %s90, %s91
    %p102 = scmp.eq.s32.totalorder %s14, 0
    %p103 = por %p101, %p102
    %p104 = scmp.ne.s32.totalorder %s90, %s91
    %p105 = scmp.eq.s32.totalorder %s15, 1
    %p106 = por %p104, %p105
    %p108 = scmp.ne.s32.totalorder %s91, %s107
    %p109 = scmp.eq.s32.totalorder %s15, 0
    %p110 = por %p108, %p109
    %p111 = scmp.le.s32.totalorder 1, %s9
    %p112 = scmp.lt.s32.totalorder %s9, 3
    %p113 = pnand %p111, %p112
    %p114 = pneg %p113
    // Predicated region
    $region9: #{stem_forward.3} parent=5 // pred_check
      _
    $region10: #{stem_forward.3} parent=5 // pred_check_branch
      %116 = sbr.rel (%p113) target = $region12
    $region11: #{stem_forward.3} parent=5 // pred_region
      %s117 = ssub.s32 %s9, 1
      // Predicated region
      $region13: #{stem_forward.3} parent=11 // pred_check
        %p118 = pneg %p56
      $region14: #{stem_forward.3} parent=11 // pred_check_branch
        %120 = sbr.rel (%p118) target = $region16
      $region15: #{stem_forward.3} parent=11 // pred_region
        _
      $region16: #{stem_forward.3} parent=11 // pred_fallthru
        _
      // Predicated region
      $region17: #{stem_forward.3} parent=11 // pred_check
        %p121 = pneg %p77
      $region18: #{stem_forward.3} parent=11 // pred_check_branch
        %123 = sbr.rel (%p121) target = $region20
      $region19: #{stem_forward.3} parent=11 // pred_region
        _
      $region20: #{stem_forward.3} parent=11 // pred_fallthru
        _
    $region12: #{stem_forward.3} parent=5 // pred_fallthru
      _
    %p124 = scmp.lt.s32.totalorder %s9, 2
    // Predicated region
    $region21: #{stem_forward.3} parent=5 // pred_check
      %p125 = pneg %p124
    $region22: #{stem_forward.3} parent=5 // pred_check_branch
      %127 = sbr.rel (%p125) target = $region24
    $region23: #{stem_forward.3} parent=5 // pred_region
      // Predicated region
      $region25: #{stem_forward.3} parent=23 // pred_check
        %p128 = pneg %p29
      $region26: #{stem_forward.3} parent=23 // pred_check_branch
        %130 = sbr.rel (%p128) target = $region28
      $region27: #{stem_forward.3} parent=23 // pred_region
        %s131 = smul.u32 16, %s9
        %p132 = scmp.lt.s32.totalorder %s131, 31
        %s133 = scalar_select %p132, %s131, 31
        %s134 = smul.addr %s133, 4
        %s135 = scalar_lea.vmem %s0, %s134
        %s136 = smul.u32 16, %s9
      $region28: #{stem_forward.3} parent=23 // pred_fallthru
        _
    $region24: #{stem_forward.3} parent=5 // pred_fallthru
      _
    %p137 = scmp.le.s32.totalorder 1, %s9
    %p138 = scmp.lt.s32.totalorder %s9, 3
    %p139 = pnand %p137, %p138
    %p140 = pneg %p139
    // Predicated region
    $region29: #{stem_forward.3} parent=5 // pred_check
      _
    $region30: #{stem_forward.3} parent=5 // pred_check_branch
      %142 = sbr.rel (%p139) target = $region32
    $region31: #{stem_forward.3} parent=5 // pred_region
      %s143 = ssub.s32 %s9, 1
      %s144 = smul.u32 16, %s14
      %p145 = scmp.lt.s32.totalorder %s144, 31
      %s146 = scalar_select %p145, %s144, 31
      %s147 = smul.addr %s146, 4
      %s148 = scalar_lea.vmem %s0, %s147
      %p149 = pneg %p35
      %p150 = pneg %p32
      %p151 = pneg %p56
      %p152 = pneg %p53
      %p153 = pneg %p77
      %p154 = pneg %p74
      %p155 = pneg %p103
      %p156 = pneg %p100
      %s157 = smul.u32 16, %s14
      %p158 = scmp.lt.s32.totalorder %s157, 31
      %s159 = scalar_select %p158, %s157, 31
      %s160 = smul.addr %s159, 4
      %s161 = scalar_lea.vmem %s3, %s160
      %s162 = smul.u32 16, %s14
      %p163 = scmp.lt.s32.totalorder %s162, 31
      %s164 = scalar_select %p163, %s162, 31
      %s165 = smul.addr %s164, 4
      %s166 = scalar_lea.vmem %s0, %s165
      %s167 = smul.u32 16, %s14
      %s168 = smul.u32 16, %s14
      %p169 = scmp.lt.s32.totalorder %s168, 31
      %s170 = scalar_select %p169, %s168, 31
      %s171 = smul.addr %s170, 4
      %s172 = scalar_lea.vmem %s3, %s171
      %s173 = smul.u32 16, %s14
      %v174 = vld [vmem:[%s166] sm:$0xf]
      %v175 = vld [vmem:[%s166 + $0x4] sm:$0xf]
      %v176 = vld [vmem:[%s166 + $0x8] sm:$0xf]
      %v177 = vld [vmem:[%s166 + $0xc] sm:$0xf]
      %v178 = vld [vmem:[%s166 + $0x10] sm:$0xf]
      %v179 = vld [vmem:[%s166 + $0x14] sm:$0xf]
      %v180 = vld [vmem:[%s166 + $0x18] sm:$0xf]
      %v181 = vld [vmem:[%s166 + $0x1c] sm:$0xf]
      %v182 = vld [vmem:[%s166 + $0x20] sm:$0xf]
      %v183 = vld [vmem:[%s166 + $0x24] sm:$0xf]
      %v184 = vld [vmem:[%s166 + $0x28] sm:$0xf]
      %v185 = vld [vmem:[%s166 + $0x2c] sm:$0xf]
      %v186 = vld [vmem:[%s166 + $0x30] sm:$0xf]
      %v187 = vld [vmem:[%s166 + $0x34] sm:$0xf]
      %v188 = vld [vmem:[%s166 + $0x38] sm:$0xf]
      %v189 = vld [vmem:[%s166 + $0x3c] sm:$0xf]
      %v190 = vunpack.c.l.bf16 %v174
      %v191 = vunpack.c.l.bf16 %v175
      %v192 = vunpack.c.l.bf16 %v176
      %v193 = vunpack.c.l.bf16 %v177
      %v194 = vunpack.c.l.bf16 %v178
      %v195 = vunpack.c.l.bf16 %v179
      %v196 = vunpack.c.l.bf16 %v180
      %v197 = vunpack.c.l.bf16 %v181
      %v198 = vunpack.c.l.bf16 %v182
      %v199 = vunpack.c.l.bf16 %v183
      %v200 = vunpack.c.l.bf16 %v184
      %v201 = vunpack.c.l.bf16 %v185
      %v202 = vunpack.c.l.bf16 %v186
      %v203 = vunpack.c.l.bf16 %v187
      %v204 = vunpack.c.l.bf16 %v188
      %v205 = vunpack.c.l.bf16 %v189
      %v206 = vld [vmem:[%s1] sm:$0x1]
      %v208 = vlaneseq
      %v209 = vshrl.u32 %v208, 7
      %v210 = vsub.s32 0, %v209
      %v211 = vrot.slane %v206, %v210
      %v213 = vmul.f32 %v190, %v211
      %v214 = vmul.f32 %v191, %v211
      %v215 = vmul.f32 %v192, %v211
      %v216 = vmul.f32 %v193, %v211
      %v217 = vmul.f32 %v194, %v211
      %v218 = vmul.f32 %v195, %v211
      %v219 = vmul.f32 %v196, %v211
      %v220 = vmul.f32 %v197, %v211
      %v221 = vmul.f32 %v198, %v211
      %v222 = vmul.f32 %v199, %v211
      %v223 = vmul.f32 %v200, %v211
      %v224 = vmul.f32 %v201, %v211
      %v225 = vmul.f32 %v202, %v211
      %v226 = vmul.f32 %v203, %v211
      %v227 = vmul.f32 %v204, %v211
      %v228 = vmul.f32 %v205, %v211
      %v229 = vld [vmem:[%s2] sm:$0x1]
      %v231 = vlaneseq
      %v232 = vshrl.u32 %v231, 7
      %v233 = vsub.s32 0, %v232
      %v234 = vrot.slane %v229, %v233
      %v236 = vadd.f32 %v213, %v234
      %v237 = vadd.f32 %v214, %v234
      %v238 = vadd.f32 %v215, %v234
      %v239 = vadd.f32 %v216, %v234
      %v240 = vadd.f32 %v217, %v234
      %v241 = vadd.f32 %v218, %v234
      %v242 = vadd.f32 %v219, %v234
      %v243 = vadd.f32 %v220, %v234
      %v244 = vadd.f32 %v221, %v234
      %v245 = vadd.f32 %v222, %v234
      %v246 = vadd.f32 %v223, %v234
      %v247 = vadd.f32 %v224, %v234
      %v248 = vadd.f32 %v225, %v234
      %v249 = vadd.f32 %v226, %v234
      %v250 = vadd.f32 %v227, %v234
      %v251 = vadd.f32 %v228, %v234
      %v252 = vmax.f32 %v236, 0.0
      %v253 = vmax.f32 %v237, 0.0
      %v254 = vmax.f32 %v238, 0.0
      %v255 = vmax.f32 %v239, 0.0
      %v256 = vmax.f32 %v240, 0.0
      %v257 = vmax.f32 %v241, 0.0
      %v258 = vmax.f32 %v242, 0.0
      %v259 = vmax.f32 %v243, 0.0
      %v260 = vmax.f32 %v244, 0.0
      %v261 = vmax.f32 %v245, 0.0
      %v262 = vmax.f32 %v246, 0.0
      %v263 = vmax.f32 %v247, 0.0
      %v264 = vmax.f32 %v248, 0.0
      %v265 = vmax.f32 %v249, 0.0
      %v266 = vmax.f32 %v250, 0.0
      %v267 = vmax.f32 %v251, 0.0
      %v268 = vpack.c.bf16 %v253, %v252
      %v269 = vpack.c.bf16 %v255, %v254
      %v270 = vpack.c.bf16 %v257, %v256
      %v271 = vpack.c.bf16 %v259, %v258
      %v272 = vpack.c.bf16 %v261, %v260
      %v273 = vpack.c.bf16 %v263, %v262
      %v274 = vpack.c.bf16 %v265, %v264
      %v275 = vpack.c.bf16 %v267, %v266
      %v284 = vunpack.c.l.b16 %v268
      %v285 = vunpack.c.h.b16 %v268
      %v286 = vunpack.c.l.b16 %v269
      %v287 = vunpack.c.h.b16 %v269
      %v288 = vunpack.c.l.b16 %v270
      %v289 = vunpack.c.h.b16 %v270
      %v290 = vunpack.c.l.b16 %v271
      %v291 = vunpack.c.h.b16 %v271
      %v292 = vunpack.c.l.b16 %v272
      %v293 = vunpack.c.h.b16 %v272
      %v294 = vunpack.c.l.b16 %v273
      %v295 = vunpack.c.h.b16 %v273
      %v296 = vunpack.c.l.b16 %v274
      %v297 = vunpack.c.h.b16 %v274
      %v298 = vunpack.c.l.b16 %v275
      %v299 = vunpack.c.h.b16 %v275
      %v300 = vpack.c.b16 %v284, %v284
      %v301 = vpack.c.b16 %v285, %v285
      %v302 = vpack.c.b16 %v286, %v286
      %v303 = vpack.c.b16 %v287, %v287
      %v304 = vpack.c.b16 %v288, %v288
      %v305 = vpack.c.b16 %v289, %v289
      %v306 = vpack.c.b16 %v290, %v290
      %v307 = vpack.c.b16 %v291, %v291
      %v308 = vpack.c.b16 %v292, %v292
      %v309 = vpack.c.b16 %v293, %v293
      %v310 = vpack.c.b16 %v294, %v294
      %v311 = vpack.c.b16 %v295, %v295
      %v312 = vpack.c.b16 %v296, %v296
      %v313 = vpack.c.b16 %v297, %v297
      %v314 = vpack.c.b16 %v298, %v298
      %v315 = vpack.c.b16 %v299, %v299
      %332 = vst [vmem:[%s172] sm:$0xf] %v300
      %333 = vst [vmem:[%s172 + $0x4] sm:$0xf] %v301
      %334 = vst [vmem:[%s172 + $0x8] sm:$0xf] %v302
      %335 = vst [vmem:[%s172 + $0xc] sm:$0xf] %v303
      %336 = vst [vmem:[%s172 + $0x10] sm:$0xf] %v304
      %337 = vst [vmem:[%s172 + $0x14] sm:$0xf] %v305
      %338 = vst [vmem:[%s172 + $0x18] sm:$0xf] %v306
      %339 = vst [vmem:[%s172 + $0x1c] sm:$0xf] %v307
      %340 = vst [vmem:[%s172 + $0x20] sm:$0xf] %v308
      %341 = vst [vmem:[%s172 + $0x24] sm:$0xf] %v309
      %342 = vst [vmem:[%s172 + $0x28] sm:$0xf] %v310
      %343 = vst [vmem:[%s172 + $0x2c] sm:$0xf] %v311
      %344 = vst [vmem:[%s172 + $0x30] sm:$0xf] %v312
      %345 = vst [vmem:[%s172 + $0x34] sm:$0xf] %v313
      %346 = vst [vmem:[%s172 + $0x38] sm:$0xf] %v314
      %347 = vst [vmem:[%s172 + $0x3c] sm:$0xf] %v315
      %s348 = smul.u32 16, %s14
      %p349 = scmp.lt.s32.totalorder %s348, 31
      %s350 = scalar_select %p349, %s348, 31
      %s351 = smul.addr %s350, 4
      %s352 = scalar_lea.vmem %s3, %s351
      // Predicated region
      $region33: #{stem_forward.3} parent=31 // pred_check
        %p353 = pneg %p100
      $region34: #{stem_forward.3} parent=31 // pred_check_branch
        %355 = sbr.rel (%p353) target = $region36
      $region35: #{stem_forward.3} parent=31 // pred_region
        %s356 = smul.u32 16, %s14
      $region36: #{stem_forward.3} parent=31 // pred_fallthru
        _
    $region32: #{stem_forward.3} parent=5 // pred_fallthru
      _
    %p357 = scmp.le.s32.totalorder 2, %s9
    // Predicated region
    $region37: #{stem_forward.3} parent=5 // pred_check
      %p358 = pneg %p357
    $region38: #{stem_forward.3} parent=5 // pred_check_branch
      %360 = sbr.rel (%p358) target = $region40
    $region39: #{stem_forward.3} parent=5 // pred_region
      %s361 = ssub.s32 %s9, 2
      // Predicated region
      $region41: #{stem_forward.3} parent=39 // pred_check
        %p362 = pneg %p106
      $region42: #{stem_forward.3} parent=39 // pred_check_branch
        %364 = sbr.rel (%p362) target = $region44
      $region43: #{stem_forward.3} parent=39 // pred_region
        %s365 = smul.u32 16, %s15
        %p366 = scmp.lt.s32.totalorder %s365, 31
        %s367 = scalar_select %p366, %s365, 31
        %s368 = smul.addr %s367, 4
        %s369 = scalar_lea.vmem %s3, %s368
      $region44: #{stem_forward.3} parent=39 // pred_fallthru
        _
    $region40: #{stem_forward.3} parent=5 // pred_fallthru
      _
  $region6: #{stem_forward.3} parent=0 // loop_footer
    %s13 = sadd.s32 1, %s9
  $region7: #{stem_forward.3} parent=0 // loop_footer_branch
    %8 = sbr.rel target = $region3
  $region8: #{stem_forward.3} parent=0 // loop_exit
    _

// kernel: stem_forward.2
$region0: #{stem_forward.2}
  #allocation0 [shape = 'u32[]', space=smem, size = 0x4, offset = 0x4, fixed_abs, tag = 'smem constant byte address 0x4 - core index']
  #allocation1 [shape = 'u32[144,128]{1,0:T(1,128)}', space=vmem, size = 0x12000, scoped, tag = 'internal scratch']
  #allocation2 [shape = 'f32[256,128]{1,0:T(8,128)}', space=vmem, size = 0x20000, scoped, tag = 'scratch operand']
  %s0 = inlined_call_operand.vmem [shape: bf16[512,256], index: 0, kind: input, shape index: {}]
  %s1 = inlined_call_operand.vmem [shape: bf16[256,128], index: 1, kind: input, shape index: {}]
  %s2 = inlined_call_operand.vmem [shape: bf16[512,128], index: 2, kind: output, shape index: {0}]
  %s3 = inlined_call_operand.vmem [shape: f32[2,1,128], index: 3, kind: output, shape index: {1}]
  %s4 = inlined_call_operand.vmem [shape: f32[2,1,128], index: 4, kind: output, shape index: {2}]
  %5 = xla_tuple %s2, %s3, %s4
  %s6 = sld [smem:[#allocation0]]
  $region65: #{stem_forward.2} parent=0
    _
  %s8 = ssub.s32 1, %s6
  %s9 = scalar_select 0, %s8, %s6
  loop: start=0, step=1, limit=4
  $region2: #{stem_forward.2} parent=0 // loop_pre_header
    _
  $region3: #{stem_forward.2} parent=0 // loop_header
    %s11 = sphi 0, %s15
    %p12 = scmp.ge.s32.totalorder %s11, 4
    %s18 = sphi 0, %s37
    %s19 = sphi 0, %s33
    %s20 = sphi 0, %s29
    %s21 = sphi 0, %s18
    %s22 = sphi 0, %s19
    %s23 = sphi 0, %s20
    %s24 = sphi 0, %s21
    %s25 = sphi 0, %s22
    %s26 = sphi 0, %s23
    %s42 = sphi 0, %s44
    %s45 = sphi 0, %s42
    %s46 = sphi 0, %s45
    %s62 = sphi 0, %s46
    %s70 = sphi 0, %s72
    %s73 = sphi 0, %s70
    %s74 = sphi 0, %s73
    %s90 = sphi 0, %s74
    %s98 = sphi 0, %s100
    %s101 = sphi 0, %s98
    %s102 = sphi 0, %s101
    %s118 = sphi 0, %s102
    %s126 = sphi 0, %s128
    %s129 = sphi 0, %s126
    %s130 = sphi 0, %s129
    %s146 = sphi 0, %s130
    %s154 = sphi 0, %s156
    %s157 = sphi 0, %s154
    %s158 = sphi 0, %s157
    %s174 = sphi 0, %s158
  $region4: #{stem_forward.2} parent=0 // loop_header_branch
    %14 = sbr.rel (%p12) target = $region8
  $region5: #{stem_forward.2} parent=0 // loop_body
    %s16 = ssub.s32 %s11, 1
    %s17 = ssub.s32 %s11, 2
    %s27 = sadd.s32 1, %s20
    %p28 = scmp.ge.s32.totalorder %s27, 1
    %s29 = scalar_select %p28, 0, %s27
    %s30 = sadd.s32 1, %s19
    %s31 = scalar_select %p28, %s30, %s19
    %p32 = scmp.ge.s32.totalorder %s31, 1
    %s33 = scalar_select %p32, 0, %s31
    %s34 = sadd.s32 1, %s18
    %s35 = scalar_select %p32, %s34, %s18
    %p36 = scmp.ge.s32.totalorder %s35, 2
    %s37 = scalar_select %p36, 0, %s35
    %s38 = ssub.s32 %s18, %s37
    %s39 = ssub.s32 %s20, %s29
    %s40 = sor.u32 %s38, %s39
    %p41 = scmp.eq.s32.totalorder %s40, 0
    %s43 = sadd.s32 %s42, 1
    %s44 = scalar_select %p41, %s42, %s43
    %p47 = pneg %p41
    %p48 = scmp.eq.s32.totalorder %s11, 1
    %p49 = por %p47, %p48
    %p50 = scmp.ne.s32.totalorder %s42, %s45
    %p51 = scmp.eq.s32.totalorder %s11, 0
    %p52 = por %p50, %p51
    %p53 = scmp.ne.s32.totalorder %s42, %s45
    %p54 = scmp.eq.s32.totalorder %s16, 1
    %p55 = por %p53, %p54
    %p56 = scmp.ne.s32.totalorder %s45, %s46
    %p57 = scmp.eq.s32.totalorder %s16, 0
    %p58 = por %p56, %p57
    %p59 = scmp.ne.s32.totalorder %s45, %s46
    %p60 = scmp.eq.s32.totalorder %s17, 1
    %p61 = por %p59, %p60
    %p63 = scmp.ne.s32.totalorder %s46, %s62
    %p64 = scmp.eq.s32.totalorder %s17, 0
    %p65 = por %p63, %p64
    %s66 = ssub.s32 %s20, %s29
    %s67 = ssub.s32 %s19, %s33
    %s68 = sor.u32 %s66, %s67
    %p69 = scmp.eq.s32.totalorder %s68, 0
    %s71 = sadd.s32 %s70, 1
    %s72 = scalar_select %p69, %s70, %s71
    %p75 = pneg %p69
    %p76 = scmp.eq.s32.totalorder %s11, 1
    %p77 = por %p75, %p76
    %p78 = scmp.ne.s32.totalorder %s70, %s73
    %p79 = scmp.eq.s32.totalorder %s11, 0
    %p80 = por %p78, %p79
    %p81 = scmp.ne.s32.totalorder %s70, %s73
    %p82 = scmp.eq.s32.totalorder %s16, 1
    %p83 = por %p81, %p82
    %p84 = scmp.ne.s32.totalorder %s73, %s74
    %p85 = scmp.eq.s32.totalorder %s16, 0
    %p86 = por %p84, %p85
    %p87 = scmp.ne.s32.totalorder %s73, %s74
    %p88 = scmp.eq.s32.totalorder %s17, 1
    %p89 = por %p87, %p88
    %p91 = scmp.ne.s32.totalorder %s74, %s90
    %p92 = scmp.eq.s32.totalorder %s17, 0
    %p93 = por %p91, %p92
    %s94 = ssub.s32 %s18, %s37
    %s95 = ssub.s32 %s19, %s33
    %s96 = sor.u32 %s94, %s95
    %p97 = scmp.eq.s32.totalorder %s96, 0
    %s99 = sadd.s32 %s98, 1
    %s100 = scalar_select %p97, %s98, %s99
    %p103 = pneg %p97
    %p104 = scmp.eq.s32.totalorder %s11, 1
    %p105 = por %p103, %p104
    %p106 = scmp.ne.s32.totalorder %s98, %s101
    %p107 = scmp.eq.s32.totalorder %s11, 0
    %p108 = por %p106, %p107
    %p109 = scmp.ne.s32.totalorder %s98, %s101
    %p110 = scmp.eq.s32.totalorder %s16, 1
    %p111 = por %p109, %p110
    %p112 = scmp.ne.s32.totalorder %s101, %s102
    %p113 = scmp.eq.s32.totalorder %s16, 0
    %p114 = por %p112, %p113
    %p115 = scmp.ne.s32.totalorder %s101, %s102
    %p116 = scmp.eq.s32.totalorder %s17, 1
    %p117 = por %p115, %p116
    %p119 = scmp.ne.s32.totalorder %s102, %s118
    %p120 = scmp.eq.s32.totalorder %s17, 0
    %p121 = por %p119, %p120
    %s122 = ssub.s32 %s18, %s37
    %s123 = ssub.s32 %s19, %s33
    %s124 = sor.u32 %s122, %s123
    %p125 = scmp.eq.s32.totalorder %s124, 0
    %s127 = sadd.s32 %s126, 1
    %s128 = scalar_select %p125, %s126, %s127
    %p131 = pneg %p125
    %p132 = scmp.eq.s32.totalorder %s11, 1
    %p133 = por %p131, %p132
    %p134 = scmp.ne.s32.totalorder %s126, %s129
    %p135 = scmp.eq.s32.totalorder %s11, 0
    %p136 = por %p134, %p135
    %p137 = scmp.ne.s32.totalorder %s126, %s129
    %p138 = scmp.eq.s32.totalorder %s16, 1
    %p139 = por %p137, %p138
    %p140 = scmp.ne.s32.totalorder %s129, %s130
    %p141 = scmp.eq.s32.totalorder %s16, 0
    %p142 = por %p140, %p141
    %p143 = scmp.ne.s32.totalorder %s129, %s130
    %p144 = scmp.eq.s32.totalorder %s17, 1
    %p145 = por %p143, %p144
    %p147 = scmp.ne.s32.totalorder %s130, %s146
    %p148 = scmp.eq.s32.totalorder %s17, 0
    %p149 = por %p147, %p148
    %s150 = ssub.s32 %s18, %s37
    %s151 = ssub.s32 %s19, %s33
    %s152 = sor.u32 %s150, %s151
    %p153 = scmp.eq.s32.totalorder %s152, 0
    %s155 = sadd.s32 %s154, 1
    %s156 = scalar_select %p153, %s154, %s155
    %p159 = pneg %p153
    %p160 = scmp.eq.s32.totalorder %s11, 1
    %p161 = por %p159, %p160
    %p162 = scmp.ne.s32.totalorder %s154, %s157
    %p163 = scmp.eq.s32.totalorder %s11, 0
    %p164 = por %p162, %p163
    %p165 = scmp.ne.s32.totalorder %s154, %s157
    %p166 = scmp.eq.s32.totalorder %s16, 1
    %p167 = por %p165, %p166
    %p168 = scmp.ne.s32.totalorder %s157, %s158
    %p169 = scmp.eq.s32.totalorder %s16, 0
    %p170 = por %p168, %p169
    %p171 = scmp.ne.s32.totalorder %s157, %s158
    %p172 = scmp.eq.s32.totalorder %s17, 1
    %p173 = por %p171, %p172
    %p175 = scmp.ne.s32.totalorder %s158, %s174
    %p176 = scmp.eq.s32.totalorder %s17, 0
    %p177 = por %p175, %p176
    %p178 = scmp.le.s32.totalorder 1, %s11
    %p179 = scmp.lt.s32.totalorder %s11, 3
    %p180 = pnand %p178, %p179
    %p181 = pneg %p180
    // Predicated region
    $region9: #{stem_forward.2} parent=5 // pred_check
      _
    $region10: #{stem_forward.2} parent=5 // pred_check_branch
      %183 = sbr.rel (%p180) target = $region12
    $region11: #{stem_forward.2} parent=5 // pred_region
      %s184 = ssub.s32 %s11, 1
      // Predicated region
      $region13: #{stem_forward.2} parent=11 // pred_check
        %p185 = pneg %p86
      $region14: #{stem_forward.2} parent=11 // pred_check_branch
        %187 = sbr.rel (%p185) target = $region16
      $region15: #{stem_forward.2} parent=11 // pred_region
        %s188 = smul.u32 32, %s23
        %p189 = scmp.lt.s32.totalorder %s188, 31
        %s190 = scalar_select %p189, %s188, 31
        %p191 = scmp.lt.s32.totalorder %s22, 0
        %s192 = scalar_select %p191, %s22, 0
        %s193 = sadd.s32 %s192, %s190
        %s194 = smul.addr %s193, 4
        %s195 = scalar_lea.vmem %s1, %s194
        %s196 = smul.u32 32, %s23
      $region16: #{stem_forward.2} parent=11 // pred_fallthru
        _
    $region12: #{stem_forward.2} parent=5 // pred_fallthru
      _
    %p197 = scmp.lt.s32.totalorder %s11, 2
    // Predicated region
    $region17: #{stem_forward.2} parent=5 // pred_check
      %p198 = pneg %p197
    $region18: #{stem_forward.2} parent=5 // pred_check_branch
      %200 = sbr.rel (%p198) target = $region20
    $region19: #{stem_forward.2} parent=5 // pred_region
      // Predicated region
      $region21: #{stem_forward.2} parent=19 // pred_check
        %p201 = pneg %p52
      $region22: #{stem_forward.2} parent=19 // pred_check_branch
        %203 = sbr.rel (%p201) target = $region24
      $region23: #{stem_forward.2} parent=19 // pred_region
        %s204 = smul.u32 32, %s18
        %s205 = smul.u32 2, %s20
        %p206 = scmp.lt.s32.totalorder %s204, 63
        %s207 = scalar_select %p206, %s204, 63
        %p208 = scmp.lt.s32.totalorder %s205, 1
        %s209 = scalar_select %p208, %s205, 1
        %s210 = smul.addr %s207, 2
        %s211 = sadd.s32 %s209, %s210
        %s212 = smul.addr %s211, 4
        %s213 = scalar_lea.vmem %s0, %s212
        %s214 = smul.u32 32, %s18
        %s215 = smul.u32 2, %s20
      $region24: #{stem_forward.2} parent=19 // pred_fallthru
        _
    $region20: #{stem_forward.2} parent=5 // pred_fallthru
      _
    %p216 = scmp.le.s32.totalorder 1, %s11
    %p217 = scmp.lt.s32.totalorder %s11, 3
    %p218 = pnand %p216, %p217
    %p219 = pneg %p218
    // Predicated region
    $region25: #{stem_forward.2} parent=5 // pred_check
      _
    $region26: #{stem_forward.2} parent=5 // pred_check_branch
      %221 = sbr.rel (%p218) target = $region28
    $region27: #{stem_forward.2} parent=5 // pred_region
      %s222 = ssub.s32 %s11, 1
      %s223 = smul.u32 32, %s21
      %s224 = smul.u32 2, %s23
      %p225 = scmp.lt.s32.totalorder %s223, 63
      %s226 = scalar_select %p225, %s223, 63
      %p227 = scmp.lt.s32.totalorder %s224, 1
      %s228 = scalar_select %p227, %s224, 1
      %s229 = smul.addr %s226, 2
      %s230 = sadd.s32 %s228, %s229
      %s231 = smul.addr %s230, 4
      %s232 = scalar_lea.vmem %s0, %s231
      %p233 = pneg %p58
      %p234 = pneg %p55
      %s235 = smul.u32 32, %s23
      %p236 = scmp.lt.s32.totalorder %s235, 31
      %s237 = scalar_select %p236, %s235, 31
      %p238 = scmp.lt.s32.totalorder %s22, 0
      %s239 = scalar_select %p238, %s22, 0
      %s240 = sadd.s32 %s239, %s237
      %s241 = smul.addr %s240, 4
      %s242 = scalar_lea.vmem %s1, %s241
      %p243 = pneg %p86
      %p244 = pneg %p83
      %p245 = pneg %p114
      %p246 = pneg %p111
      %s247 = smul.u32 32, %s21
      %p248 = scmp.lt.s32.totalorder %s247, 63
      %s249 = scalar_select %p248, %s247, 63
      %p250 = scmp.lt.s32.totalorder %s22, 0
      %s251 = scalar_select %p250, %s22, 0
      %s252 = sadd.s32 %s251, %s249
      %s253 = smul.addr %s252, 4
      %s254 = scalar_lea.vmem %s2, %s253
      %p255 = pneg %p142
      %p256 = pneg %p139
      %p257 = scmp.lt.s32.totalorder %s21, 1
      %s258 = scalar_select %p257, %s21, 1
      %p259 = scmp.lt.s32.totalorder %s22, 0
      %s260 = scalar_select %p259, %s22, 0
      %s261 = sadd.s32 %s260, %s258
      %s262 = scalar_lea.vmem %s3, %s261
      %p263 = pneg %p170
      %p264 = pneg %p167
      %p265 = scmp.lt.s32.totalorder %s21, 1
      %s266 = scalar_select %p265, %s21, 1
      %p267 = scmp.lt.s32.totalorder %s22, 0
      %s268 = scalar_select %p267, %s22, 0
      %s269 = sadd.s32 %s268, %s266
      %s270 = scalar_lea.vmem %s4, %s269
      %s271 = smul.u32 32, %s21
      %s272 = smul.u32 2, %s23
      %p273 = scmp.lt.s32.totalorder %s271, 63
      %s274 = scalar_select %p273, %s271, 63
      %p275 = scmp.lt.s32.totalorder %s272, 1
      %s276 = scalar_select %p275, %s272, 1
      %s277 = smul.addr %s274, 2
      %s278 = sadd.s32 %s276, %s277
      %s279 = smul.addr %s278, 4
      %s280 = scalar_lea.vmem %s0, %s279
      %s281 = smul.u32 32, %s21
      %s282 = smul.u32 2, %s23
      %s283 = smul.u32 32, %s23
      %p284 = scmp.lt.s32.totalorder %s283, 31
      %s285 = scalar_select %p284, %s283, 31
      %p286 = scmp.lt.s32.totalorder %s22, 0
      %s287 = scalar_select %p286, %s22, 0
      %s288 = sadd.s32 %s287, %s285
      %s289 = smul.addr %s288, 4
      %s290 = scalar_lea.vmem %s1, %s289
      %s291 = smul.u32 32, %s23
      %s292 = smul.u32 32, %s21
      %p293 = scmp.lt.s32.totalorder %s292, 63
      %s294 = scalar_select %p293, %s292, 63
      %p295 = scmp.lt.s32.totalorder %s22, 0
      %s296 = scalar_select %p295, %s22, 0
      %s297 = sadd.s32 %s296, %s294
      %s298 = smul.addr %s297, 4
      %s299 = scalar_lea.vmem %s2, %s298
      %s300 = smul.u32 32, %s21
      %p301 = scmp.lt.s32.totalorder %s21, 1
      %s302 = scalar_select %p301, %s21, 1
      %p303 = scmp.lt.s32.totalorder %s22, 0
      %s304 = scalar_select %p303, %s22, 0
      %s305 = sadd.s32 %s304, %s302
      %s306 = scalar_lea.vmem %s3, %s305
      %p307 = scmp.lt.s32.totalorder %s21, 1
      %s308 = scalar_select %p307, %s21, 1
      %p309 = scmp.lt.s32.totalorder %s22, 0
      %s310 = scalar_select %p309, %s22, 0
      %s311 = sadd.s32 %s310, %s308
      %s312 = scalar_lea.vmem %s4, %s311
      %p314 = scmp.eq.s32.totalorder %s23, 0
      // Predicated region
      $region29: #{stem_forward.2} parent=27 // pred_check
        %p315 = pneg %p314
      $region30: #{stem_forward.2} parent=27 // pred_check_branch
        %317 = sbr.rel (%p315) target = $region32
      $region31: #{stem_forward.2} parent=27 // pred_region
        %318 = vst [vmem:[#allocation2] sm:$0xff] 0.0
        %319 = vst [vmem:[#allocation2 + $0x8] sm:$0xff] 0.0
        %320 = vst [vmem:[#allocation2 + $0x10] sm:$0xff] 0.0
        %321 = vst [vmem:[#allocation2 + $0x18] sm:$0xff] 0.0
        %322 = vst [vmem:[#allocation2 + $0x20] sm:$0xff] 0.0
        %323 = vst [vmem:[#allocation2 + $0x28] sm:$0xff] 0.0
        %324 = vst [vmem:[#allocation2 + $0x30] sm:$0xff] 0.0
        %325 = vst [vmem:[#allocation2 + $0x38] sm:$0xff] 0.0
        %326 = vst [vmem:[#allocation2 + $0x40] sm:$0xff] 0.0
        %327 = vst [vmem:[#allocation2 + $0x48] sm:$0xff] 0.0
        %328 = vst [vmem:[#allocation2 + $0x50] sm:$0xff] 0.0
        %329 = vst [vmem:[#allocation2 + $0x58] sm:$0xff] 0.0
        %330 = vst [vmem:[#allocation2 + $0x60] sm:$0xff] 0.0
        %331 = vst [vmem:[#allocation2 + $0x68] sm:$0xff] 0.0
        %332 = vst [vmem:[#allocation2 + $0x70] sm:$0xff] 0.0
        %333 = vst [vmem:[#allocation2 + $0x78] sm:$0xff] 0.0
        %334 = vst [vmem:[#allocation2 + $0x80] sm:$0xff] 0.0
        %335 = vst [vmem:[#allocation2 + $0x88] sm:$0xff] 0.0
        %336 = vst [vmem:[#allocation2 + $0x90] sm:$0xff] 0.0
        %337 = vst [vmem:[#allocation2 + $0x98] sm:$0xff] 0.0
        %338 = vst [vmem:[#allocation2 + $0xa0] sm:$0xff] 0.0
        %339 = vst [vmem:[#allocation2 + $0xa8] sm:$0xff] 0.0
        %340 = vst [vmem:[#allocation2 + $0xb0] sm:$0xff] 0.0
        %341 = vst [vmem:[#allocation2 + $0xb8] sm:$0xff] 0.0
        %342 = vst [vmem:[#allocation2 + $0xc0] sm:$0xff] 0.0
        %343 = vst [vmem:[#allocation2 + $0xc8] sm:$0xff] 0.0
        %344 = vst [vmem:[#allocation2 + $0xd0] sm:$0xff] 0.0
        %345 = vst [vmem:[#allocation2 + $0xd8] sm:$0xff] 0.0
        %346 = vst [vmem:[#allocation2 + $0xe0] sm:$0xff] 0.0
        %347 = vst [vmem:[#allocation2 + $0xe8] sm:$0xff] 0.0
        %348 = vst [vmem:[#allocation2 + $0xf0] sm:$0xff] 0.0
        %349 = vst [vmem:[#allocation2 + $0xf8] sm:$0xff] 0.0
      $region32: #{stem_forward.2} parent=27 // pred_fallthru
        _
      %v350 = vld [vmem:[#allocation2] sm:$0xff]
      %v351 = vld [vmem:[#allocation2 + $0x8] sm:$0xff]
      %v352 = vld [vmem:[#allocation2 + $0x10] sm:$0xff]
      %v353 = vld [vmem:[#allocation2 + $0x18] sm:$0xff]
      %v354 = vld [vmem:[#allocation2 + $0x20] sm:$0xff]
      %v355 = vld [vmem:[#allocation2 + $0x28] sm:$0xff]
      %v356 = vld [vmem:[#allocation2 + $0x30] sm:$0xff]
      %v357 = vld [vmem:[#allocation2 + $0x38] sm:$0xff]
      %v358 = vld [vmem:[#allocation2 + $0x40] sm:$0xff]
      %v359 = vld [vmem:[#allocation2 + $0x48] sm:$0xff]
      %v360 = vld [vmem:[#allocation2 + $0x50] sm:$0xff]
      %v361 = vld [vmem:[#allocation2 + $0x58] sm:$0xff]
      %v362 = vld [vmem:[#allocation2 + $0x60] sm:$0xff]
      %v363 = vld [vmem:[#allocation2 + $0x68] sm:$0xff]
      %v364 = vld [vmem:[#allocation2 + $0x70] sm:$0xff]
      %v365 = vld [vmem:[#allocation2 + $0x78] sm:$0xff]
      %v366 = vld [vmem:[#allocation2 + $0x80] sm:$0xff]
      %v367 = vld [vmem:[#allocation2 + $0x88] sm:$0xff]
      %v368 = vld [vmem:[#allocation2 + $0x90] sm:$0xff]
      %v369 = vld [vmem:[#allocation2 + $0x98] sm:$0xff]
      %v370 = vld [vmem:[#allocation2 + $0xa0] sm:$0xff]
      %v371 = vld [vmem:[#allocation2 + $0xa8] sm:$0xff]
      %v372 = vld [vmem:[#allocation2 + $0xb0] sm:$0xff]
      %v373 = vld [vmem:[#allocation2 + $0xb8] sm:$0xff]
      %v374 = vld [vmem:[#allocation2 + $0xc0] sm:$0xff]
      %v375 = vld [vmem:[#allocation2 + $0xc8] sm:$0xff]
      %v376 = vld [vmem:[#allocation2 + $0xd0] sm:$0xff]
      %v377 = vld [vmem:[#allocation2 + $0xd8] sm:$0xff]
      %v378 = vld [vmem:[#allocation2 + $0xe0] sm:$0xff]
      %v379 = vld [vmem:[#allocation2 + $0xe8] sm:$0xff]
      %v380 = vld [vmem:[#allocation2 + $0xf0] sm:$0xff]
      %v381 = vld [vmem:[#allocation2 + $0xf8] sm:$0xff]
      %v382 = vld [vmem:[%s280] sm:$0xff]
      %v383 = vld [vmem:[%s280 + $0x8] sm:$0xff]
      %v384 = vld [vmem:[%s280 + $0x10] sm:$0xff]
      %v385 = vld [vmem:[%s280 + $0x18] sm:$0xff]
      %v386 = vld [vmem:[%s280 + $0x20] sm:$0xff]
      %v387 = vld [vmem:[%s280 + $0x28] sm:$0xff]
      %v388 = vld [vmem:[%s280 + $0x30] sm:$0xff]
      %v389 = vld [vmem:[%s280 + $0x38] sm:$0xff]
      %v390 = vld [vmem:[%s280 + $0x40] sm:$0xff]
      %v391 = vld [vmem:[%s280 + $0x48] sm:$0xff]
      %v392 = vld [vmem:[%s280 + $0x50] sm:$0xff]
      %v393 = vld [vmem:[%s280 + $0x58] sm:$0xff]
      %v394 = vld [vmem:[%s280 + $0x60] sm:$0xff]
      %v395 = vld [vmem:[%s280 + $0x68] sm:$0xff]
      %v396 = vld [vmem:[%s280 + $0x70] sm:$0xff]
      %v397 = vld [vmem:[%s280 + $0x78] sm:$0xff]
      %v398 = vld [vmem:[%s280 + $0x80] sm:$0xff]
      %v399 = vld [vmem:[%s280 + $0x88] sm:$0xff]
      %v400 = vld [vmem:[%s280 + $0x90] sm:$0xff]
      %v401 = vld [vmem:[%s280 + $0x98] sm:$0xff]
      %v402 = vld [vmem:[%s280 + $0xa0] sm:$0xff]
      %v403 = vld [vmem:[%s280 + $0xa8] sm:$0xff]
      %v404 = vld [vmem:[%s280 + $0xb0] sm:$0xff]
      %v405 = vld [vmem:[%s280 + $0xb8] sm:$0xff]
      %v406 = vld [vmem:[%s280 + $0xc0] sm:$0xff]
      %v407 = vld [vmem:[%s280 + $0xc8] sm:$0xff]
      %v408 = vld [vmem:[%s280 + $0xd0] sm:$0xff]
      %v409 = vld [vmem:[%s280 + $0xd8] sm:$0xff]
      %v410 = vld [vmem:[%s280 + $0xe0] sm:$0xff]
      %v411 = vld [vmem:[%s280 + $0xe8] sm:$0xff]
      %v412 = vld [vmem:[%s280 + $0xf0] sm:$0xff]
      %v413 = vld [vmem:[%s280 + $0xf8] sm:$0xff]
      %v414 = vld [vmem:[%s290] sm:$0xf]
      %v415 = vld [vmem:[%s290 + $0x4] sm:$0xf]
      %v416 = vld [vmem:[%s290 + $0x8] sm:$0xf]
      %v417 = vld [vmem:[%s290 + $0xc] sm:$0xf]
      %v418 = vld [vmem:[%s290 + $0x10] sm:$0xf]
      %v419 = vld [vmem:[%s290 + $0x14] sm:$0xf]
      %v420 = vld [vmem:[%s290 + $0x18] sm:$0xf]
      %v421 = vld [vmem:[%s290 + $0x1c] sm:$0xf]
      %v422 = vld [vmem:[%s290 + $0x20] sm:$0xf]
      %v423 = vld [vmem:[%s290 + $0x24] sm:$0xf]
      %v424 = vld [vmem:[%s290 + $0x28] sm:$0xf]
      %v425 = vld [vmem:[%s290 + $0x2c] sm:$0xf]
      %v426 = vld [vmem:[%s290 + $0x30] sm:$0xf]
      %v427 = vld [vmem:[%s290 + $0x34] sm:$0xf]
      %v428 = vld [vmem:[%s290 + $0x38] sm:$0xf]
      %v429 = vld [vmem:[%s290 + $0x3c] sm:$0xf]
      %v430 = vld [vmem:[%s290 + $0x40] sm:$0xf]
      %v431 = vld [vmem:[%s290 + $0x44] sm:$0xf]
      %v432 = vld [vmem:[%s290 + $0x48] sm:$0xf]
      %v433 = vld [vmem:[%s290 + $0x4c] sm:$0xf]
      %v434 = vld [vmem:[%s290 + $0x50] sm:$0xf]
      %v435 = vld [vmem:[%s290 + $0x54] sm:$0xf]
      %v436 = vld [vmem:[%s290 + $0x58] sm:$0xf]
      %v437 = vld [vmem:[%s290 + $0x5c] sm:$0xf]
      %v438 = vld [vmem:[%s290 + $0x60] sm:$0xf]
      %v439 = vld [vmem:[%s290 + $0x64] sm:$0xf]
      %v440 = vld [vmem:[%s290 + $0x68] sm:$0xf]
      %v441 = vld [vmem:[%s290 + $0x6c] sm:$0xf]
      %v442 = vld [vmem:[%s290 + $0x70] sm:$0xf]
      %v443 = vld [vmem:[%s290 + $0x74] sm:$0xf]
      %v444 = vld [vmem:[%s290 + $0x78] sm:$0xf]
      %v445 = vld [vmem:[%s290 + $0x7c] sm:$0xf]
      %v478 = vunpack.c.l.b16 %v382
      %v479 = vunpack.c.h.b16 %v382
      %v480 = vunpack.c.l.b16 %v383
      %v481 = vunpack.c.h.b16 %v383
      %v482 = vunpack.c.l.b16 %v384
      %v483 = vunpack.c.h.b16 %v384
      %v484 = vunpack.c.l.b16 %v385
      %v485 = vunpack.c.h.b16 %v385
      %v486 = vunpack.c.l.b16 %v386
      %v487 = vunpack.c.h.b16 %v386
      %v488 = vunpack.c.l.b16 %v387
      %v489 = vunpack.c.h.b16 %v387
      %v490 = vunpack.c.l.b16 %v388
      %v491 = vunpack.c.h.b16 %v388
      %v492 = vunpack.c.l.b16 %v389
      %v493 = vunpack.c.h.b16 %v389
      %v494 = vunpack.c.l.b16 %v390
      %v495 = vunpack.c.h.b16 %v390
      %v496 = vunpack.c.l.b16 %v391
      %v497 = vunpack.c.h.b16 %v391
      %v498 = vunpack.c.l.b16 %v392
      %v499 = vunpack.c.h.b16 %v392
      %v500 = vunpack.c.l.b16 %v393
      %v501 = vunpack.c.h.b16 %v393
      %v502 = vunpack.c.l.b16 %v394
      %v503 = vunpack.c.h.b16 %v394
      %v504 = vunpack.c.l.b16 %v395
      %v505 = vunpack.c.h.b16 %v395
      %v506 = vunpack.c.l.b16 %v396
      %v507 = vunpack.c.h.b16 %v396
      %v508 = vunpack.c.l.b16 %v397
      %v509 = vunpack.c.h.b16 %v397
      %v510 = vunpack.c.l.b16 %v398
      %v511 = vunpack.c.h.b16 %v398
      %v512 = vunpack.c.l.b16 %v399
      %v513 = vunpack.c.h.b16 %v399
      %v514 = vunpack.c.l.b16 %v400
      %v515 = vunpack.c.h.b16 %v400
      %v516 = vunpack.c.l.b16 %v401
      %v517 = vunpack.c.h.b16 %v401
      %v518 = vunpack.c.l.b16 %v402
      %v519 = vunpack.c.h.b16 %v402
      %v520 = vunpack.c.l.b16 %v403
      %v521 = vunpack.c.h.b16 %v403
      %v522 = vunpack.c.l.b16 %v404
      %v523 = vunpack.c.h.b16 %v404
      %v524 = vunpack.c.l.b16 %v405
      %v525 = vunpack.c.h.b16 %v405
      %v526 = vunpack.c.l.b16 %v406
      %v527 = vunpack.c.h.b16 %v406
      %v528 = vunpack.c.l.b16 %v407
      %v529 = vunpack.c.h.b16 %v407
      %v530 = vunpack.c.l.b16 %v408
      %v531 = vunpack.c.h.b16 %v408
      %v532 = vunpack.c.l.b16 %v409
      %v533 = vunpack.c.h.b16 %v409
      %v534 = vunpack.c.l.b16 %v410
      %v535 = vunpack.c.h.b16 %v410
      %v536 = vunpack.c.l.b16 %v411
      %v537 = vunpack.c.h.b16 %v411
      %v538 = vunpack.c.l.b16 %v412
      %v539 = vunpack.c.h.b16 %v412
      %v540 = vunpack.c.l.b16 %v413
      %v541 = vunpack.c.h.b16 %v413
      %v542 = vpack.c.b16 %v480, %v478
      %v543 = vpack.c.b16 %v481, %v479
      %v544 = vpack.c.b16 %v484, %v482
      %v545 = vpack.c.b16 %v485, %v483
      %v546 = vpack.c.b16 %v488, %v486
      %v547 = vpack.c.b16 %v489, %v487
      %v548 = vpack.c.b16 %v492, %v490
      %v549 = vpack.c.b16 %v493, %v491
      %v550 = vpack.c.b16 %v496, %v494
      %v551 = vpack.c.b16 %v497, %v495
      %v552 = vpack.c.b16 %v500, %v498
      %v553 = vpack.c.b16 %v501, %v499
      %v554 = vpack.c.b16 %v504, %v502
      %v555 = vpack.c.b16 %v505, %v503
      %v556 = vpack.c.b16 %v508, %v506
      %v557 = vpack.c.b16 %v509, %v507
      %v558 = vpack.c.b16 %v512, %v510
      %v559 = vpack.c.b16 %v513, %v511
      %v560 = vpack.c.b16 %v516, %v514
      %v561 = vpack.c.b16 %v517, %v515
      %v562 = vpack.c.b16 %v520, %v518
      %v563 = vpack.c.b16 %v521, %v519
      %v564 = vpack.c.b16 %v524, %v522
      %v565 = vpack.c.b16 %v525, %v523
      %v566 = vpack.c.b16 %v528, %v526
      %v567 = vpack.c.b16 %v529, %v527
      %v568 = vpack.c.b16 %v532, %v530
      %v569 = vpack.c.b16 %v533, %v531
      %v570 = vpack.c.b16 %v536, %v534
      %v571 = vpack.c.b16 %v537, %v535
      %v572 = vpack.c.b16 %v540, %v538
      %v573 = vpack.c.b16 %v541, %v539
      %v638 = vunpack.c.l.b16 %v414
      %v639 = vunpack.c.l.b16 %v415
      %v640 = vunpack.c.l.b16 %v416
      %v641 = vunpack.c.l.b16 %v417
      %v642 = vunpack.c.l.b16 %v418
      %v643 = vunpack.c.l.b16 %v419
      %v644 = vunpack.c.l.b16 %v420
      %v645 = vunpack.c.l.b16 %v421
      %v646 = vunpack.c.l.b16 %v422
      %v647 = vunpack.c.l.b16 %v423
      %v648 = vunpack.c.l.b16 %v424
      %v649 = vunpack.c.l.b16 %v425
      %v650 = vunpack.c.l.b16 %v426
      %v651 = vunpack.c.l.b16 %v427
      %v652 = vunpack.c.l.b16 %v428
      %v653 = vunpack.c.l.b16 %v429
      %v654 = vunpack.c.l.b16 %v430
      %v655 = vunpack.c.l.b16 %v431
      %v656 = vunpack.c.l.b16 %v432
      %v657 = vunpack.c.l.b16 %v433
      %v658 = vunpack.c.l.b16 %v434
      %v659 = vunpack.c.l.b16 %v435
      %v660 = vunpack.c.l.b16 %v436
      %v661 = vunpack.c.l.b16 %v437
      %v662 = vunpack.c.l.b16 %v438
      %v663 = vunpack.c.l.b16 %v439
      %v664 = vunpack.c.l.b16 %v440
      %v665 = vunpack.c.l.b16 %v441
      %v666 = vunpack.c.l.b16 %v442
      %v667 = vunpack.c.l.b16 %v443
      %v668 = vunpack.c.l.b16 %v444
      %v669 = vunpack.c.l.b16 %v445
      %v670 = vpack.c.b16 %v639, %v638
      %v671 = vpack.c.b16 %v641, %v640
      %v672 = vpack.c.b16 %v643, %v642
      %v673 = vpack.c.b16 %v645, %v644
      %v674 = vpack.c.b16 %v647, %v646
      %v675 = vpack.c.b16 %v649, %v648
      %v676 = vpack.c.b16 %v651, %v650
      %v677 = vpack.c.b16 %v653, %v652
      %v678 = vpack.c.b16 %v655, %v654
      %v679 = vpack.c.b16 %v657, %v656
      %v680 = vpack.c.b16 %v659, %v658
      %v681 = vpack.c.b16 %v661, %v660
      %v682 = vpack.c.b16 %v663, %v662
      %v683 = vpack.c.b16 %v665, %v664
      %v684 = vpack.c.b16 %v667, %v666
      %v685 = vpack.c.b16 %v669, %v668
      %702 = vmatprep.subr.bf16.mxu0 0
      %703 = vmatpush1.bf16.msra.mxu0 %v670
      %704 = vmatprep.subr.bf16.mxu0 0
      %705 = vmatpush1.bf16.msra.mxu0 %v671
      %706 = vmatprep.subr.bf16.mxu0 0
      %707 = vmatpush1.bf16.msra.mxu0 %v672
      %708 = vmatprep.subr.bf16.mxu0 0
      %709 = vmatpush1.bf16.msra.mxu0 %v673
      %710 = vmatprep.subr.bf16.mxu0 0
      %711 = vmatpush1.bf16.msra.mxu0 %v674
      %712 = vmatprep.subr.bf16.mxu0 0
      %713 = vmatpush1.bf16.msra.mxu0 %v675
      %714 = vmatprep.subr.bf16.mxu0 0
      %715 = vmatpush1.bf16.msra.mxu0 %v676
      %716 = vmatprep.subr.bf16.mxu0 0
      %717 = vmatpush1.bf16.msra.mxu0 %v677
      %718 = vmatprep.subr.bf16.mxu0 0
      %719 = vmatpush1.bf16.msra.mxu0 %v678
      %720 = vmatprep.subr.bf16.mxu0 0
      %721 = vmatpush1.bf16.msra.mxu0 %v679
      %722 = vmatprep.subr.bf16.mxu0 0
      %723 = vmatpush1.bf16.msra.mxu0 %v680
      %724 = vmatprep.subr.bf16.mxu0 0
      %725 = vmatpush1.bf16.msra.mxu0 %v681
      %726 = vmatprep.subr.bf16.mxu0 0
      %727 = vmatpush1.bf16.msra.mxu0 %v682
      %728 = vmatprep.subr.bf16.mxu0 0
      %729 = vmatpush1.bf16.msra.mxu0 %v683
      %730 = vmatprep.subr.bf16.mxu0 0
      %731 = vmatpush1.bf16.msra.mxu0 %v684
      %732 = vmatprep.subr.bf16.mxu0 0
      %733 = vmatpush1.bf16.msra.mxu0 %v685
      %734 = vmatprep.mubr.bf16.mxu0 %v543
      %735 = vmatmul.mubr.bf16.gmra.mrb[0].mxu0 %v542
      %v736 = vpop.f32.mrb[0].mxu0
      %v737 = vadd.f32 0.0, %v736
      %v738 = vpop.f32.mrb[0].mxu0
      %v739 = vpop.f32.mrb[0].mxu0
      %v740 = vadd.f32 0.0, %v739
      %v741 = vpop.f32.mrb[0].mxu0
      %742 = vmatprep.mubr.bf16.mxu0 %v545
      %743 = vmatmul.mubr.bf16.gmra.mrb[0].mxu0 %v544
      %v744 = vpop.f32.mrb[0].mxu0
      %v745 = vadd.f32 0.0, %v744
      %v746 = vpop.f32.mrb[0].mxu0
      %v747 = vpop.f32.mrb[0].mxu0
      %v748 = vadd.f32 0.0, %v747
      %v749 = vpop.f32.mrb[0].mxu0
      %750 = vmatprep.mubr.bf16.mxu0 %v547
      %751 = vmatmul.mubr.bf16.gmra.mrb[0].mxu0 %v546
      %v752 = vpop.f32.mrb[0].mxu0
      %v753 = vadd.f32 0.0, %v752
      %v754 = vpop.f32.mrb[0].mxu0
      %v755 = vpop.f32.mrb[0].mxu0
      %v756 = vadd.f32 0.0, %v755
      %v757 = vpop.f32.mrb[0].mxu0
      %758 = vmatprep.mubr.bf16.mxu0 %v549
      %759 = vmatmul.mubr.bf16.gmra.mrb[0].mxu0 %v548
      %v760 = vpop.f32.mrb[0].mxu0
      %v761 = vadd.f32 0.0, %v760
      %v762 = vpop.f32.mrb[0].mxu0
      %v763 = vpop.f32.mrb[0].mxu0
      %v764 = vadd.f32 0.0, %v763
      %v765 = vpop.f32.mrb[0].mxu0
      %766 = vmatprep.mubr.bf16.mxu0 %v551
      %767 = vmatmul.mubr.bf16.gmra.mrb[0].mxu0 %v550
      %v768 = vpop.f32.mrb[0].mxu0
      %v769 = vadd.f32 0.0, %v768
      %v770 = vpop.f32.mrb[0].mxu0
      %v771 = vpop.f32.mrb[0].mxu0
      %v772 = vadd.f32 0.0, %v771
      %v773 = vpop.f32.mrb[0].mxu0
      %774 = vmatprep.mubr.bf16.mxu0 %v553
      %775 = vmatmul.mubr.bf16.gmra.mrb[0].mxu0 %v552
      %v776 = vpop.f32.mrb[0].mxu0
      %v777 = vadd.f32 0.0, %v776
      %v778 = vpop.f32.mrb[0].mxu0
      %v779 = vpop.f32.mrb[0].mxu0
      %v780 = vadd.f32 0.0, %v779
      %v781 = vpop.f32.mrb[0].mxu0
      %782 = vmatprep.mubr.bf16.mxu0 %v555
      %783 = vmatmul.mubr.bf16.gmra.mrb[0].mxu0 %v554
      %v784 = vpop.f32.mrb[0].mxu0
      %v785 = vadd.f32 0.0, %v784
      %v786 = vpop.f32.mrb[0].mxu0
      %v787 = vpop.f32.mrb[0].mxu0
      %v788 = vadd.f32 0.0, %v787
      %v789 = vpop.f32.mrb[0].mxu0
      %790 = vmatprep.mubr.bf16.mxu0 %v557
      %791 = vmatmul.mubr.bf16.gmra.mrb[0].mxu0 %v556
      %v792 = vpop.f32.mrb[0].mxu0
      %v793 = vadd.f32 0.0, %v792
      %v794 = vpop.f32.mrb[0].mxu0
      %v795 = vpop.f32.mrb[0].mxu0
      %v796 = vadd.f32 0.0, %v795
      %v797 = vpop.f32.mrb[0].mxu0
      %798 = vmatprep.mubr.bf16.mxu0 %v559
      %799 = vmatmul.mubr.bf16.gmra.mrb[0].mxu0 %v558
      %v800 = vpop.f32.mrb[0].mxu0
      %v801 = vadd.f32 0.0, %v800
      %v802 = vpop.f32.mrb[0].mxu0
      %v803 = vpop.f32.mrb[0].mxu0
      %v804 = vadd.f32 0.0, %v803
      %v805 = vpop.f32.mrb[0].mxu0
      %806 = vmatprep.mubr.bf16.mxu0 %v561
      %807 = vmatmul.mubr.bf16.gmra.mrb[0].mxu0 %v560
      %v808 = vpop.f32.mrb[0].mxu0
      %v809 = vadd.f32 0.0, %v808
      %v810 = vpop.f32.mrb[0].mxu0
      %v811 = vpop.f32.mrb[0].mxu0
      %v812 = vadd.f32 0.0, %v811
      %v813 = vpop.f32.mrb[0].mxu0
      %814 = vmatprep.mubr.bf16.mxu0 %v563
      %815 = vmatmul.mubr.bf16.gmra.mrb[0].mxu0 %v562
      %v816 = vpop.f32.mrb[0].mxu0
      %v817 = vadd.f32 0.0, %v816
      %v818 = vpop.f32.mrb[0].mxu0
      %v819 = vpop.f32.mrb[0].mxu0
      %v820 = vadd.f32 0.0, %v819
      %v821 = vpop.f32.mrb[0].mxu0
      %822 = vmatprep.mubr.bf16.mxu0 %v565
      %823 = vmatmul.mubr.bf16.gmra.mrb[0].mxu0 %v564
      %v824 = vpop.f32.mrb[0].mxu0
      %v825 = vadd.f32 0.0, %v824
      %v826 = vpop.f32.mrb[0].mxu0
      %v827 = vpop.f32.mrb[0].mxu0
      %v828 = vadd.f32 0.0, %v827
      %v829 = vpop.f32.mrb[0].mxu0
      %830 = vmatprep.mubr.bf16.mxu0 %v567
      %831 = vmatmul.mubr.bf16.gmra.mrb[0].mxu0 %v566
      %v832 = vpop.f32.mrb[0].mxu0
      %v833 = vadd.f32 0.0, %v832
      %v834 = vpop.f32.mrb[0].mxu0
      %v835 = vpop.f32.mrb[0].mxu0
      %v836 = vadd.f32 0.0, %v835
      %v837 = vpop.f32.mrb[0].mxu0
      %838 = vmatprep.mubr.bf16.mxu0 %v569
      %839 = vmatmul.mubr.bf16.gmra.mrb[0].mxu0 %v568
      %v840 = vpop.f32.mrb[0].mxu0
      %v841 = vadd.f32 0.0, %v840
      %v842 = vpop.f32.mrb[0].mxu0
      %v843 = vpop.f32.mrb[0].mxu0
      %v844 = vadd.f32 0.0, %v843
      %v845 = vpop.f32.mrb[0].mxu0
      %846 = vmatprep.mubr.bf16.mxu0 %v571
      %847 = vmatmul.mubr.bf16.gmra.mrb[0].mxu0 %v570
      %v848 = vpop.f32.mrb[0].mxu0
      %v849 = vadd.f32 0.0, %v848
      %v850 = vpop.f32.mrb[0].mxu0
      %v851 = vpop.f32.mrb[0].mxu0
      %v852 = vadd.f32 0.0, %v851
      %v853 = vpop.f32.mrb[0].mxu0
      %854 = vmatprep.mubr.bf16.mxu0 %v573
      %855 = vmatmul.mubr.bf16.gmra.mrb[0].mxu0 %v572
      %v856 = vpop.f32.mrb[0].mxu0
      %v857 = vadd.f32 0.0, %v856
      %v858 = vpop.f32.mrb[0].mxu0
      %v859 = vpop.f32.mrb[0].mxu0
      %v860 = vadd.f32 0.0, %v859
      %v861 = vpop.f32.mrb[0].mxu0
      %862 = vdwg.mxu0
      %v863 = vadd.f32 %v350, %v737
      %v864 = vadd.f32 %v351, %v740
      %v865 = vadd.f32 %v352, %v745
      %v866 = vadd.f32 %v353, %v748
      %v867 = vadd.f32 %v354, %v753
      %v868 = vadd.f32 %v355, %v756
      %v869 = vadd.f32 %v356, %v761
      %v870 = vadd.f32 %v357, %v764
      %v871 = vadd.f32 %v358, %v769
      %v872 = vadd.f32 %v359, %v772
      %v873 = vadd.f32 %v360, %v777
      %v874 = vadd.f32 %v361, %v780
      %v875 = vadd.f32 %v362, %v785
      %v876 = vadd.f32 %v363, %v788
      %v877 = vadd.f32 %v364, %v793
      %v878 = vadd.f32 %v365, %v796
      %v879 = vadd.f32 %v366, %v801
      %v880 = vadd.f32 %v367, %v804
      %v881 = vadd.f32 %v368, %v809
      %v882 = vadd.f32 %v369, %v812
      %v883 = vadd.f32 %v370, %v817
      %v884 = vadd.f32 %v371, %v820
      %v885 = vadd.f32 %v372, %v825
      %v886 = vadd.f32 %v373, %v828
      %v887 = vadd.f32 %v374, %v833
      %v888 = vadd.f32 %v375, %v836
      %v889 = vadd.f32 %v376, %v841
      %v890 = vadd.f32 %v377, %v844
      %v891 = vadd.f32 %v378, %v849
      %v892 = vadd.f32 %v379, %v852
      %v893 = vadd.f32 %v380, %v857
      %v894 = vadd.f32 %v381, %v860
      %895 = vst [vmem:[#allocation2] sm:$0xff] %v863
      %896 = vst [vmem:[#allocation2 + $0x8] sm:$0xff] %v864
      %897 = vst [vmem:[#allocation2 + $0x10] sm:$0xff] %v865
      %898 = vst [vmem:[#allocation2 + $0x18] sm:$0xff] %v866
      %899 = vst [vmem:[#allocation2 + $0x20] sm:$0xff] %v867
      %900 = vst [vmem:[#allocation2 + $0x28] sm:$0xff] %v868
      %901 = vst [vmem:[#allocation2 + $0x30] sm:$0xff] %v869
      %902 = vst [vmem:[#allocation2 + $0x38] sm:$0xff] %v870
      %903 = vst [vmem:[#allocation2 + $0x40] sm:$0xff] %v871
      %904 = vst [vmem:[#allocation2 + $0x48] sm:$0xff] %v872
      %905 = vst [vmem:[#allocation2 + $0x50] sm:$0xff] %v873
      %906 = vst [vmem:[#allocation2 + $0x58] sm:$0xff] %v874
      %907 = vst [vmem:[#allocation2 + $0x60] sm:$0xff] %v875
      %908 = vst [vmem:[#allocation2 + $0x68] sm:$0xff] %v876
      %909 = vst [vmem:[#allocation2 + $0x70] sm:$0xff] %v877
      %910 = vst [vmem:[#allocation2 + $0x78] sm:$0xff] %v878
      %911 = vst [vmem:[#allocation2 + $0x80] sm:$0xff] %v879
      %912 = vst [vmem:[#allocation2 + $0x88] sm:$0xff] %v880
      %913 = vst [vmem:[#allocation2 + $0x90] sm:$0xff] %v881
      %914 = vst [vmem:[#allocation2 + $0x98] sm:$0xff] %v882
      %915 = vst [vmem:[#allocation2 + $0xa0] sm:$0xff] %v883
      %916 = vst [vmem:[#allocation2 + $0xa8] sm:$0xff] %v884
      %917 = vst [vmem:[#allocation2 + $0xb0] sm:$0xff] %v885
      %918 = vst [vmem:[#allocation2 + $0xb8] sm:$0xff] %v886
      %919 = vst [vmem:[#allocation2 + $0xc0] sm:$0xff] %v887
      %920 = vst [vmem:[#allocation2 + $0xc8] sm:$0xff] %v888
      %921 = vst [vmem:[#allocation2 + $0xd0] sm:$0xff] %v889
      %922 = vst [vmem:[#allocation2 + $0xd8] sm:$0xff] %v890
      %923 = vst [vmem:[#allocation2 + $0xe0] sm:$0xff] %v891
      %924 = vst [vmem:[#allocation2 + $0xe8] sm:$0xff] %v892
      %925 = vst [vmem:[#allocation2 + $0xf0] sm:$0xff] %v893
      %926 = vst [vmem:[#allocation2 + $0xf8] sm:$0xff] %v894
      // Predicated region
      $region33: #{stem_forward.2} parent=27 // pred_check
        %p927 = pneg %p314
      $region34: #{stem_forward.2} parent=27 // pred_check_branch
        %929 = sbr.rel (%p927) target = $region36
      $region35: #{stem_forward.2} parent=27 // pred_region
        %v930 = vld [vmem:[#allocation2] sm:$0xff]
        %v931 = vld [vmem:[#allocation2 + $0x8] sm:$0xff]
        %v932 = vld [vmem:[#allocation2 + $0x10] sm:$0xff]
        %v933 = vld [vmem:[#allocation2 + $0x18] sm:$0xff]
        %v934 = vld [vmem:[#allocation2 + $0x20] sm:$0xff]
        %v935 = vld [vmem:[#allocation2 + $0x28] sm:$0xff]
        %v936 = vld [vmem:[#allocation2 + $0x30] sm:$0xff]
        %v937 = vld [vmem:[#allocation2 + $0x38] sm:$0xff]
        %v938 = vld [vmem:[#allocation2 + $0x40] sm:$0xff]
        %v939 = vld [vmem:[#allocation2 + $0x48] sm:$0xff]
        %v940 = vld [vmem:[#allocation2 + $0x50] sm:$0xff]
        %v941 = vld [vmem:[#allocation2 + $0x58] sm:$0xff]
        %v942 = vld [vmem:[#allocation2 + $0x60] sm:$0xff]
        %v943 = vld [vmem:[#allocation2 + $0x68] sm:$0xff]
        %v944 = vld [vmem:[#allocation2 + $0x70] sm:$0xff]
        %v945 = vld [vmem:[#allocation2 + $0x78] sm:$0xff]
        %v946 = vld [vmem:[#allocation2 + $0x80] sm:$0xff]
        %v947 = vld [vmem:[#allocation2 + $0x88] sm:$0xff]
        %v948 = vld [vmem:[#allocation2 + $0x90] sm:$0xff]
        %v949 = vld [vmem:[#allocation2 + $0x98] sm:$0xff]
        %v950 = vld [vmem:[#allocation2 + $0xa0] sm:$0xff]
        %v951 = vld [vmem:[#allocation2 + $0xa8] sm:$0xff]
        %v952 = vld [vmem:[#allocation2 + $0xb0] sm:$0xff]
        %v953 = vld [vmem:[#allocation2 + $0xb8] sm:$0xff]
        %v954 = vld [vmem:[#allocation2 + $0xc0] sm:$0xff]
        %v955 = vld [vmem:[#allocation2 + $0xc8] sm:$0xff]
        %v956 = vld [vmem:[#allocation2 + $0xd0] sm:$0xff]
        %v957 = vld [vmem:[#allocation2 + $0xd8] sm:$0xff]
        %v958 = vld [vmem:[#allocation2 + $0xe0] sm:$0xff]
        %v959 = vld [vmem:[#allocation2 + $0xe8] sm:$0xff]
        %v960 = vld [vmem:[#allocation2 + $0xf0] sm:$0xff]
        %v961 = vld [vmem:[#allocation2 + $0xf8] sm:$0xff]
        %v962 = vadd.f32 %v930, %v931
        %v963 = vadd.f32 %v962, %v932
        %v964 = vadd.f32 %v963, %v933
        %v965 = vadd.f32 %v964, %v934
        %v966 = vadd.f32 %v965, %v935
        %v967 = vadd.f32 %v966, %v936
        %v968 = vadd.f32 %v967, %v937
        %v969 = vadd.f32 %v968, %v938
        %v970 = vadd.f32 %v969, %v939
        %v971 = vadd.f32 %v970, %v940
        %v972 = vadd.f32 %v971, %v941
        %v973 = vadd.f32 %v972, %v942
        %v974 = vadd.f32 %v973, %v943
        %v975 = vadd.f32 %v974, %v944
        %v976 = vadd.f32 %v975, %v945
        %v977 = vadd.f32 %v976, %v946
        %v978 = vadd.f32 %v977, %v947
        %v979 = vadd.f32 %v978, %v948
        %v980 = vadd.f32 %v979, %v949
        %v981 = vadd.f32 %v980, %v950
        %v982 = vadd.f32 %v981, %v951
        %v983 = vadd.f32 %v982, %v952
        %v984 = vadd.f32 %v983, %v953
        %v985 = vadd.f32 %v984, %v954
        %v986 = vadd.f32 %v985, %v955
        %v987 = vadd.f32 %v986, %v956
        %v988 = vadd.f32 %v987, %v957
        %v989 = vadd.f32 %v988, %v958
        %v990 = vadd.f32 %v989, %v959
        %v991 = vadd.f32 %v990, %v960
        %v992 = vadd.f32 %v991, %v961
        %v993 = vrot.slane %v992, 4
        %v994 = vadd.f32 %v992, %v993
        %v995 = vrot.slane %v994, 2
        %v996 = vadd.f32 %v994, %v995
        %v997 = vrot.slane %v996, 1
        %v998 = vadd.f32 %v996, %v997
        %999 = vst [vmem:[%s306] sm:$0x1] %v998
        %v1000 = vmul.f32 %v930, %v930
        %v1001 = vmul.f32 %v931, %v931
        %v1002 = vmul.f32 %v932, %v932
        %v1003 = vmul.f32 %v933, %v933
        %v1004 = vmul.f32 %v934, %v934
        %v1005 = vmul.f32 %v935, %v935
        %v1006 = vmul.f32 %v936, %v936
        %v1007 = vmul.f32 %v937, %v937
        %v1008 = vmul.f32 %v938, %v938
        %v1009 = vmul.f32 %v939, %v939
        %v1010 = vmul.f32 %v940, %v940
        %v1011 = vmul.f32 %v941, %v941
        %v1012 = vmul.f32 %v942, %v942
        %v1013 = vmul.f32 %v943, %v943
        %v1014 = vmul.f32 %v944, %v944
        %v1015 = vmul.f32 %v945, %v945
        %v1016 = vmul.f32 %v946, %v946
        %v1017 = vmul.f32 %v947, %v947
        %v1018 = vmul.f32 %v948, %v948
        %v1019 = vmul.f32 %v949, %v949
        %v1020 = vmul.f32 %v950, %v950
        %v1021 = vmul.f32 %v951, %v951
        %v1022 = vmul.f32 %v952, %v952
        %v1023 = vmul.f32 %v953, %v953
        %v1024 = vmul.f32 %v954, %v954
        %v1025 = vmul.f32 %v955, %v955
        %v1026 = vmul.f32 %v956, %v956
        %v1027 = vmul.f32 %v957, %v957
        %v1028 = vmul.f32 %v958, %v958
        %v1029 = vmul.f32 %v959, %v959
        %v1030 = vmul.f32 %v960, %v960
        %v1031 = vmul.f32 %v961, %v961
        %v1032 = vadd.f32 %v1000, %v1001
        %v1033 = vadd.f32 %v1032, %v1002
        %v1034 = vadd.f32 %v1033, %v1003
        %v1035 = vadd.f32 %v1034, %v1004
        %v1036 = vadd.f32 %v1035, %v1005
        %v1037 = vadd.f32 %v1036, %v1006
        %v1038 = vadd.f32 %v1037, %v1007
        %v1039 = vadd.f32 %v1038, %v1008
        %v1040 = vadd.f32 %v1039, %v1009
        %v1041 = vadd.f32 %v1040, %v1010
        %v1042 = vadd.f32 %v1041, %v1011
        %v1043 = vadd.f32 %v1042, %v1012
        %v1044 = vadd.f32 %v1043, %v1013
        %v1045 = vadd.f32 %v1044, %v1014
        %v1046 = vadd.f32 %v1045, %v1015
        %v1047 = vadd.f32 %v1046, %v1016
        %v1048 = vadd.f32 %v1047, %v1017
        %v1049 = vadd.f32 %v1048, %v1018
        %v1050 = vadd.f32 %v1049, %v1019
        %v1051 = vadd.f32 %v1050, %v1020
        %v1052 = vadd.f32 %v1051, %v1021
        %v1053 = vadd.f32 %v1052, %v1022
        %v1054 = vadd.f32 %v1053, %v1023
        %v1055 = vadd.f32 %v1054, %v1024
        %v1056 = vadd.f32 %v1055, %v1025
        %v1057 = vadd.f32 %v1056, %v1026
        %v1058 = vadd.f32 %v1057, %v1027
        %v1059 = vadd.f32 %v1058, %v1028
        %v1060 = vadd.f32 %v1059, %v1029
        %v1061 = vadd.f32 %v1060, %v1030
        %v1062 = vadd.f32 %v1061, %v1031
        %v1063 = vrot.slane %v1062, 4
        %v1064 = vadd.f32 %v1062, %v1063
        %v1065 = vrot.slane %v1064, 2
        %v1066 = vadd.f32 %v1064, %v1065
        %v1067 = vrot.slane %v1066, 1
        %v1068 = vadd.f32 %v1066, %v1067
        %1069 = vst [vmem:[%s312] sm:$0x1] %v1068
        %v1070 = vpack.c.bf16 %v931, %v930
        %v1071 = vpack.c.bf16 %v933, %v932
        %v1072 = vpack.c.bf16 %v935, %v934
        %v1073 = vpack.c.bf16 %v937, %v936
        %v1074 = vpack.c.bf16 %v939, %v938
        %v1075 = vpack.c.bf16 %v941, %v940
        %v1076 = vpack.c.bf16 %v943, %v942
        %v1077 = vpack.c.bf16 %v945, %v944
        %v1078 = vpack.c.bf16 %v947, %v946
        %v1079 = vpack.c.bf16 %v949, %v948
        %v1080 = vpack.c.bf16 %v951, %v950
        %v1081 = vpack.c.bf16 %v953, %v952
        %v1082 = vpack.c.bf16 %v955, %v954
        %v1083 = vpack.c.bf16 %v957, %v956
        %v1084 = vpack.c.bf16 %v959, %v958
        %v1085 = vpack.c.bf16 %v961, %v960
        %v1102 = vunpack.c.l.b16 %v1070
        %v1103 = vunpack.c.h.b16 %v1070
        %v1104 = vunpack.c.l.b16 %v1071
        %v1105 = vunpack.c.h.b16 %v1071
        %v1106 = vunpack.c.l.b16 %v1072
        %v1107 = vunpack.c.h.b16 %v1072
        %v1108 = vunpack.c.l.b16 %v1073
        %v1109 = vunpack.c.h.b16 %v1073
        %v1110 = vunpack.c.l.b16 %v1074
        %v1111 = vunpack.c.h.b16 %v1074
        %v1112 = vunpack.c.l.b16 %v1075
        %v1113 = vunpack.c.h.b16 %v1075
        %v1114 = vunpack.c.l.b16 %v1076
        %v1115 = vunpack.c.h.b16 %v1076
        %v1116 = vunpack.c.l.b16 %v1077
        %v1117 = vunpack.c.h.b16 %v1077
        %v1118 = vunpack.c.l.b16 %v1078
        %v1119 = vunpack.c.h.b16 %v1078
        %v1120 = vunpack.c.l.b16 %v1079
        %v1121 = vunpack.c.h.b16 %v1079
        %v1122 = vunpack.c.l.b16 %v1080
        %v1123 = vunpack.c.h.b16 %v1080
        %v1124 = vunpack.c.l.b16 %v1081
        %v1125 = vunpack.c.h.b16 %v1081
        %v1126 = vunpack.c.l.b16 %v1082
        %v1127 = vunpack.c.h.b16 %v1082
        %v1128 = vunpack.c.l.b16 %v1083
        %v1129 = vunpack.c.h.b16 %v1083
        %v1130 = vunpack.c.l.b16 %v1084
        %v1131 = vunpack.c.h.b16 %v1084
        %v1132 = vunpack.c.l.b16 %v1085
        %v1133 = vunpack.c.h.b16 %v1085
        %v1134 = vpack.c.b16 %v1102, %v1102
        %v1135 = vpack.c.b16 %v1103, %v1103
        %v1136 = vpack.c.b16 %v1104, %v1104
        %v1137 = vpack.c.b16 %v1105, %v1105
        %v1138 = vpack.c.b16 %v1106, %v1106
        %v1139 = vpack.c.b16 %v1107, %v1107
        %v1140 = vpack.c.b16 %v1108, %v1108
        %v1141 = vpack.c.b16 %v1109, %v1109
        %v1142 = vpack.c.b16 %v1110, %v1110
        %v1143 = vpack.c.b16 %v1111, %v1111
        %v1144 = vpack.c.b16 %v1112, %v1112
        %v1145 = vpack.c.b16 %v1113, %v1113
        %v1146 = vpack.c.b16 %v1114, %v1114
        %v1147 = vpack.c.b16 %v1115, %v1115
        %v1148 = vpack.c.b16 %v1116, %v1116
        %v1149 = vpack.c.b16 %v1117, %v1117
        %v1150 = vpack.c.b16 %v1118, %v1118
        %v1151 = vpack.c.b16 %v1119, %v1119
        %v1152 = vpack.c.b16 %v1120, %v1120
        %v1153 = vpack.c.b16 %v1121, %v1121
        %v1154 = vpack.c.b16 %v1122, %v1122
        %v1155 = vpack.c.b16 %v1123, %v1123
        %v1156 = vpack.c.b16 %v1124, %v1124
        %v1157 = vpack.c.b16 %v1125, %v1125
        %v1158 = vpack.c.b16 %v1126, %v1126
        %v1159 = vpack.c.b16 %v1127, %v1127
        %v1160 = vpack.c.b16 %v1128, %v1128
        %v1161 = vpack.c.b16 %v1129, %v1129
        %v1162 = vpack.c.b16 %v1130, %v1130
        %v1163 = vpack.c.b16 %v1131, %v1131
        %v1164 = vpack.c.b16 %v1132, %v1132
        %v1165 = vpack.c.b16 %v1133, %v1133
        %1198 = vst [vmem:[%s299] sm:$0xf] %v1134
        %1199 = vst [vmem:[%s299 + $0x4] sm:$0xf] %v1135
        %1200 = vst [vmem:[%s299 + $0x8] sm:$0xf] %v1136
        %1201 = vst [vmem:[%s299 + $0xc] sm:$0xf] %v1137
        %1202 = vst [vmem:[%s299 + $0x10] sm:$0xf] %v1138
        %1203 = vst [vmem:[%s299 + $0x14] sm:$0xf] %v1139
        %1204 = vst [vmem:[%s299 + $0x18] sm:$0xf] %v1140
        %1205 = vst [vmem:[%s299 + $0x1c] sm:$0xf] %v1141
        %1206 = vst [vmem:[%s299 + $0x20] sm:$0xf] %v1142
        %1207 = vst [vmem:[%s299 + $0x24] sm:$0xf] %v1143
        %1208 = vst [vmem:[%s299 + $0x28] sm:$0xf] %v1144
        %1209 = vst [vmem:[%s299 + $0x2c] sm:$0xf] %v1145
        %1210 = vst [vmem:[%s299 + $0x30] sm:$0xf] %v1146
        %1211 = vst [vmem:[%s299 + $0x34] sm:$0xf] %v1147
        %1212 = vst [vmem:[%s299 + $0x38] sm:$0xf] %v1148
        %1213 = vst [vmem:[%s299 + $0x3c] sm:$0xf] %v1149
        %1214 = vst [vmem:[%s299 + $0x40] sm:$0xf] %v1150
        %1215 = vst [vmem:[%s299 + $0x44] sm:$0xf] %v1151
        %1216 = vst [vmem:[%s299 + $0x48] sm:$0xf] %v1152
        %1217 = vst [vmem:[%s299 + $0x4c] sm:$0xf] %v1153
        %1218 = vst [vmem:[%s299 + $0x50] sm:$0xf] %v1154
        %1219 = vst [vmem:[%s299 + $0x54] sm:$0xf] %v1155
        %1220 = vst [vmem:[%s299 + $0x58] sm:$0xf] %v1156
        %1221 = vst [vmem:[%s299 + $0x5c] sm:$0xf] %v1157
        %1222 = vst [vmem:[%s299 + $0x60] sm:$0xf] %v1158
        %1223 = vst [vmem:[%s299 + $0x64] sm:$0xf] %v1159
        %1224 = vst [vmem:[%s299 + $0x68] sm:$0xf] %v1160
        %1225 = vst [vmem:[%s299 + $0x6c] sm:$0xf] %v1161
        %1226 = vst [vmem:[%s299 + $0x70] sm:$0xf] %v1162
        %1227 = vst [vmem:[%s299 + $0x74] sm:$0xf] %v1163
        %1228 = vst [vmem:[%s299 + $0x78] sm:$0xf] %v1164
        %1229 = vst [vmem:[%s299 + $0x7c] sm:$0xf] %v1165
      $region36: #{stem_forward.2} parent=27 // pred_fallthru
        _
      %s1230 = smul.u32 32, %s21
      %p1231 = scmp.lt.s32.totalorder %s1230, 63
      %s1232 = scalar_select %p1231, %s1230, 63
      %p1233 = scmp.lt.s32.totalorder %s22, 0
      %s1234 = scalar_select %p1233, %s22, 0
      %s1235 = sadd.s32 %s1234, %s1232
      %s1236 = smul.addr %s1235, 4
      %s1237 = scalar_lea.vmem %s2, %s1236
      %p1238 = scmp.lt.s32.totalorder %s21, 1
      %s1239 = scalar_select %p1238, %s21, 1
      %p1240 = scmp.lt.s32.totalorder %s22, 0
      %s1241 = scalar_select %p1240, %s22, 0
      %s1242 = sadd.s32 %s1241, %s1239
      %s1243 = scalar_lea.vmem %s3, %s1242
      %p1244 = scmp.lt.s32.totalorder %s21, 1
      %s1245 = scalar_select %p1244, %s21, 1
      %p1246 = scmp.lt.s32.totalorder %s22, 0
      %s1247 = scalar_select %p1246, %s22, 0
      %s1248 = sadd.s32 %s1247, %s1245
      %s1249 = scalar_lea.vmem %s4, %s1248
      // Predicated region
      $region37: #{stem_forward.2} parent=27 // pred_check
        %p1250 = pneg %p111
      $region38: #{stem_forward.2} parent=27 // pred_check_branch
        %1252 = sbr.rel (%p1250) target = $region40
      $region39: #{stem_forward.2} parent=27 // pred_region
        %s1253 = smul.u32 32, %s21
      $region40: #{stem_forward.2} parent=27 // pred_fallthru
        _
      // Predicated region
      $region41: #{stem_forward.2} parent=27 // pred_check
        %p1254 = pneg %p139
      $region42: #{stem_forward.2} parent=27 // pred_check_branch
        %1256 = sbr.rel (%p1254) target = $region44
      $region43: #{stem_forward.2} parent=27 // pred_region
        _
      $region44: #{stem_forward.2} parent=27 // pred_fallthru
        _
      // Predicated region
      $region45: #{stem_forward.2} parent=27 // pred_check
        %p1257 = pneg %p167
      $region46: #{stem_forward.2} parent=27 // pred_check_branch
        %1259 = sbr.rel (%p1257) target = $region48
      $region47: #{stem_forward.2} parent=27 // pred_region
        _
      $region48: #{stem_forward.2} parent=27 // pred_fallthru
        _
    $region28: #{stem_forward.2} parent=5 // pred_fallthru
      _
    %p1260 = scmp.le.s32.totalorder 2, %s11
    // Predicated region
    $region49: #{stem_forward.2} parent=5 // pred_check
      %p1261 = pneg %p1260
    $region50: #{stem_forward.2} parent=5 // pred_check_branch
      %1263 = sbr.rel (%p1261) target = $region52
    $region51: #{stem_forward.2} parent=5 // pred_region
      %s1264 = ssub.s32 %s11, 2
      // Predicated region
      $region53: #{stem_forward.2} parent=51 // pred_check
        %p1265 = pneg %p117
      $region54: #{stem_forward.2} parent=51 // pred_check_branch
        %1267 = sbr.rel (%p1265) target = $region56
      $region55: #{stem_forward.2} parent=51 // pred_region
        %s1268 = smul.u32 32, %s24
        %p1269 = scmp.lt.s32.totalorder %s1268, 63
        %s1270 = scalar_select %p1269, %s1268, 63
        %p1271 = scmp.lt.s32.totalorder %s25, 0
        %s1272 = scalar_select %p1271, %s25, 0
        %s1273 = sadd.s32 %s1272, %s1270
        %s1274 = smul.addr %s1273, 4
        %s1275 = scalar_lea.vmem %s2, %s1274
      $region56: #{stem_forward.2} parent=51 // pred_fallthru
        _
      // Predicated region
      $region57: #{stem_forward.2} parent=51 // pred_check
        %p1276 = pneg %p145
      $region58: #{stem_forward.2} parent=51 // pred_check_branch
        %1278 = sbr.rel (%p1276) target = $region60
      $region59: #{stem_forward.2} parent=51 // pred_region
        %p1279 = scmp.lt.s32.totalorder %s24, 1
        %s1280 = scalar_select %p1279, %s24, 1
        %p1281 = scmp.lt.s32.totalorder %s25, 0
        %s1282 = scalar_select %p1281, %s25, 0
        %s1283 = sadd.s32 %s1282, %s1280
        %s1284 = scalar_lea.vmem %s3, %s1283
      $region60: #{stem_forward.2} parent=51 // pred_fallthru
        _
      // Predicated region
      $region61: #{stem_forward.2} parent=51 // pred_check
        %p1285 = pneg %p173
      $region62: #{stem_forward.2} parent=51 // pred_check_branch
        %1287 = sbr.rel (%p1285) target = $region64
      $region63: #{stem_forward.2} parent=51 // pred_region
        %p1288 = scmp.lt.s32.totalorder %s24, 1
        %s1289 = scalar_select %p1288, %s24, 1
        %p1290 = scmp.lt.s32.totalorder %s25, 0
        %s1291 = scalar_select %p1290, %s25, 0
        %s1292 = sadd.s32 %s1291, %s1289
        %s1293 = scalar_lea.vmem %s4, %s1292
      $region64: #{stem_forward.2} parent=51 // pred_fallthru
        _
    $region52: #{stem_forward.2} parent=5 // pred_fallthru
      _
  $region6: #{stem_forward.2} parent=0 // loop_footer
    %s15 = sadd.s32 1, %s11
  $region7: #{stem_forward.2} parent=0 // loop_footer_branch
    %10 = sbr.rel target = $region3
  $region8: #{stem_forward.2} parent=0 // loop_exit
    _

</llo_original>
